<compile_context>
chip_gen: v5e
topology: v5e:2x2
jax: 0.10.0
libtpu: 0.0.40
codegen_flags: <defaults>
</compile_context>

<pallas_src>
import jax
import jax.numpy as jnp
from jax.experimental import pallas as pl
from jax.experimental.pallas import tpu as pltpu


def _round_up(x, m):
    return ((x + m - 1) // m) * m


def _vmem_capacity_bytes():
    """Physical VMEM per core; conservative (v7x) fallback if query unavailable."""
    try:
        return int(pltpu.get_tpu_info().vmem_capacity_bytes)
    except Exception:
        return 64 << 20


def _default_block_b():
    """256 rows on 256x256-MXU chips (v6e/v7x), 128 on 128x128-MXU chips."""
    try:
        kind = jax.devices()[0].device_kind.lower()
    except Exception:
        return 128
    for old in ("v2", "v3", "v4", "v5"):
        if old in kind:
            return 128
    return 256


def _make_multidae_kernel(n_layers):
    """normalize -> [Linear+tanh]*(n-1) (once per batch tile) -> Linear N-tile."""
    n_hidden = n_layers - 1

    def kernel(*refs):
        # refs = (x, w0, b0, ..., w_last, b_last, out, h_scratch)
        x_ref = refs[0]
        out_ref = refs[-2]
        h_ref = refs[-1]
        param_refs = refs[1:-2]

        j = pl.program_id(1)

        # Encoder + hidden decoder layers: run once per batch tile (j == 0),
        # stash the small latent activation in VMEM scratch (persists across j).
        @pl.when(j == 0)
        def _encode():
            x = x_ref[...]                                  # bf16 (block_b, d_in)
            xf = x.astype(jnp.float32)
            # F.normalize: x / max(||x||_2, 1e-12). rsqrt(max(sq,1e-24)) is the
            # same quantity (sqrt monotone) and uses the EUP instead of a divide.
            sq = jnp.sum(xf * xf, axis=-1, keepdims=True)
            scale = jax.lax.rsqrt(jnp.maximum(sq, 1e-24))
            # Dropout is identity at inference time.
            # TODO(synk): training-mode dropout (random mask + 1/(1-p) scale).
            h = x * scale.astype(x.dtype)                   # stays bf16 (MXU-ready)
            for i in range(n_hidden):
                w = param_refs[2 * i][...]                  # (d_in, d_out), bf16
                b = param_refs[2 * i + 1][...]              # (1, d_out),    f32
                a = jnp.dot(h, w, preferred_element_type=jnp.float32) + b
                h = jnp.tanh(a).astype(h_ref.dtype)
            h_ref[...] = h

        # Last layer, one N tile per j step (no tanh).
        w_last = param_refs[2 * n_hidden][...]              # (d_hid, tile_n) bf16
        b_last = param_refs[2 * n_hidden + 1][...]          # (1, tile_n)     f32
        out = jnp.dot(h_ref[...], w_last, preferred_element_type=jnp.float32) + b_last
        out_ref[...] = out.astype(out_ref.dtype)

    return kernel


def multidae_forward(x, weights, biases, *, block_b=None, tile_n=None,
                     param_dtype=jnp.bfloat16, act_dtype=jnp.bfloat16,
                     out_dtype=jnp.float32):
    """x: (B, dims[0]); weights[i]: (d_in, d_out); biases[i]: (d_out,) or (1, d_out).

    NOTE: param_dtype / act_dtype default to bf16 (f32 MXU accumulation); pass
    jnp.float32 for both if bit-closer parity with the f32 PyTorch model is needed.
    """
    n_layers = len(weights)
    assert n_layers >= 1
    B, d_in0 = x.shape
    assert weights[0].shape[0] == d_in0
    d_last_in = weights[-1].shape[0]
    out_dim = weights[-1].shape[1]

    cap = _vmem_capacity_bytes()
    if block_b is None:
        block_b = _default_block_b()

    act_sz = jnp.dtype(act_dtype).itemsize
    par_sz = jnp.dtype(param_dtype).itemsize
    out_sz = jnp.dtype(out_dtype).itemsize

    # Activations / input streamed in low precision; biases + accumulation in f32.
    x = x.astype(act_dtype)
    weights = [w.astype(param_dtype) for w in weights]
    biases = [b.astype(jnp.float32).reshape(1, -1) for b in biases]

    # ---- batch tiling (clamp tile to batch; pad only the ragged remainder) ----
    block_b = min(block_b, _round_up(B, 8))
    Bp = _round_up(B, block_b)
    if Bp != B:
        # TODO(synk): mask the ragged last tile in-kernel instead of padding, to
        # avoid this extra (bf16) HBM pass for very large ragged batches.
        x = jnp.pad(x, ((0, Bp - B), (0, 0)))
    n_i = Bp // block_b

    # ---- last-layer N tiling (auto: only when full residency would be tight) ----
    hidden_bytes = sum(w.size * w.dtype.itemsize + b.size * b.dtype.itemsize
                       for w, b in zip(weights[:-1], biases[:-1]))
    if tile_n is None:
        resident_full = (hidden_bytes
                         + d_last_in * out_dim * par_sz + out_dim * 4
                         + 2 * block_b * d_in0 * act_sz
                         + 2 * block_b * out_dim * out_sz
                         + block_b * d_last_in * act_sz
                         + 2 * block_b * max(out_dim, d_in0) * 4)
        tile_n = out_dim if resident_full < int(cap * 0.6) else 2048
    tile_n = min(tile_n, out_dim)
    if tile_n < out_dim:
        tile_n = max(128, (tile_n // 128) * 128)
    out_dim_p = _round_up(out_dim, tile_n)
    n_j = out_dim_p // tile_n
    if out_dim_p != out_dim:
        weights[-1] = jnp.pad(weights[-1], ((0, 0), (0, out_dim_p - out_dim)))
        biases[-1] = jnp.pad(biases[-1], ((0, 0), (0, out_dim_p - out_dim)))

    # ---- VMEM budget: double-buffered I/O tiles + params + scratch + f32 temps ----
    last_bufs = 1 if n_j == 1 else 2
    max_w = max([w.shape[1] for w in weights[:-1]] + [tile_n, d_in0])
    needed = (2 * block_b * d_in0 * act_sz                       # x (double-buffered)
              + 2 * block_b * tile_n * out_sz                    # out (double-buffered)
              + 2 * hidden_bytes                                 # hidden params (worst case 2x)
              + last_bufs * (d_last_in * tile_n * par_sz + tile_n * 4)
              + block_b * d_last_in * act_sz                     # latent scratch
              + 2 * block_b * max_w * 4)                         # f32 matmul temporaries
    vmem_limit = int(needed * 1.4) + (4 << 20)
    vmem_limit = max(vmem_limit, 32 << 20)
    vmem_limit = min(vmem_limit, cap - (4 << 20))

    args = [x]
    for w, b in zip(weights, biases):
        args += [w, b]

    def _spec(shape, index_map, single_buffer):
        if single_buffer:
            return pl.BlockSpec(shape, index_map, pipeline_mode=pl.Buffered(1))
        return pl.BlockSpec(shape, index_map)

    kernel = _make_multidae_kernel(n_layers)

    def _build_call(single_buffer_resident):
        in_specs = [pl.BlockSpec((block_b, d_in0), lambda i, j: (i, 0))]
        for w, b in zip(weights[:-1], biases[:-1]):
            in_specs.append(_spec(w.shape, lambda i, j: (0, 0), single_buffer_resident))
            in_specs.append(_spec(b.shape, lambda i, j: (0, 0), single_buffer_resident))
        # Last layer tiled along N; double-buffer only if it actually cycles over j.
        last_single = single_buffer_resident and (n_j == 1)
        in_specs.append(_spec((d_last_in, tile_n), lambda i, j: (0, j), last_single))
        in_specs.append(_spec((1, tile_n), lambda i, j: (0, j), last_single))
        out_specs = pl.BlockSpec((block_b, tile_n), lambda i, j: (i, j))

        grid_spec = pltpu.PrefetchScalarGridSpec(
            num_scalar_prefetch=0,
            grid=(n_i, n_j),
            in_specs=in_specs,
            out_specs=out_specs,
            scratch_shapes=[pltpu.VMEM((block_b, d_last_in), act_dtype)])

        return pl.pallas_call(
            kernel,
            out_shape=jax.ShapeDtypeStruct((Bp, out_dim_p), out_dtype),
            grid_spec=grid_spec,
            compiler_params=pltpu.CompilerParams(
                dimension_semantics=("parallel", "arbitrary"),
                vmem_limit_bytes=int(vmem_limit)),
        )(*args)

    try:
        out = jax.block_until_ready(_build_call(True))
    except Exception:
        # Fallback for Pallas versions that reject Buffered(1): correctness first.
        out = _build_call(False)

    return out[:B, :out_dim]


def _reference_forward(x, weights, biases):
    """Pure-JAX f32 reference matching the PyTorch forward (eval mode)."""
    x = x.astype(jnp.float32)
    norm = jnp.sqrt(jnp.sum(x * x, axis=-1, keepdims=True))
    h = x / jnp.maximum(norm, 1e-12)
    for i, (w, b) in enumerate(zip(weights, biases)):
        h = h @ w + b.reshape(-1)
        if i != len(weights) - 1:
            h = jnp.tanh(h)
    return h


def _init_params(key, dims):
    """Deterministic init matching MultiDAE.init_weights (xavier-style normal)."""
    weights, biases = [], []
    for d_in, d_out in zip(dims[:-1], dims[1:]):
        key, kw, kb = jax.random.split(key, 3)
        std = (2.0 / (d_in + d_out)) ** 0.5
        # PyTorch Linear.weight is (d_out, d_in); we store the transpose (d_in, d_out).
        w = std * jax.random.normal(kw, (d_in, d_out), dtype=jnp.float32)
        b = 0.001 * jax.random.normal(kb, (1, d_out), dtype=jnp.float32)
        weights.append(w)
        biases.append(b)
    return weights, biases


if __name__ == "__main__":
    # Small MultiDAE: p_dims = [latent=32, hidden=64, n_items=256]
    # q_dims = p_dims[::-1] = [256, 64, 32]
    # dims   = [256, 64, 32, 64, 256]  ->  4 Linear layers.
    p_dims = [32, 64, 256]
    q_dims = p_dims[::-1]
    dims = q_dims + p_dims[1:]

    batch = 20
    key = jax.random.PRNGKey(0)
    key, kx = jax.random.split(key)
    # Collaborative-filtering style input: binary implicit-feedback rows.
    x = jax.random.uniform(kx, (batch, dims[0]), dtype=jnp.float32)
    x = (x > 0.5).astype(jnp.float32)

    weights, biases = _init_params(key, dims)
    ref = _reference_forward(x, weights, biases)

    # 1) Exercise batch tiling (ragged pad: 20 -> 24) AND last-layer N tiling (256 -> 2x128).
    out1 = jax.block_until_ready(
        multidae_forward(x, weights, biases, block_b=8, tile_n=128))
    assert out1.shape == (batch, dims[-1])
    assert jnp.allclose(out1, ref, atol=3e-2, rtol=3e-2), "mismatch (tiled path)"

    # 2) Auto-tiling path (single batch tile, last layer fully resident).
    out2 = jax.block_until_ready(multidae_forward(x, weights, biases))
    assert out2.shape == (batch, dims[-1])
    assert jnp.allclose(out2, ref, atol=3e-2, rtol=3e-2), "mismatch (resident path)"

    print("KERNEL_OK")
</pallas_src>

<mosaic_0001>
module attributes {stable_mosaic.version = 11 : i64} {
  func.func @kernel(%arg0: i32, %arg1: i32, %arg2: memref<8x256xbf16, #tpu.memory_space<vmem>>, %arg3: memref<256x64xbf16, #tpu.memory_space<vmem>>, %arg4: memref<1x64xf32, #tpu.memory_space<vmem>>, %arg5: memref<64x32xbf16, #tpu.memory_space<vmem>>, %arg6: memref<1x32xf32, #tpu.memory_space<vmem>>, %arg7: memref<32x64xbf16, #tpu.memory_space<vmem>>, %arg8: memref<1x64xf32, #tpu.memory_space<vmem>>, %arg9: memref<64x128xbf16, #tpu.memory_space<vmem>>, %arg10: memref<1x128xf32, #tpu.memory_space<vmem>>, %arg11: memref<8x128xf32, #tpu.memory_space<vmem>>, %arg12: memref<8x64xbf16, #tpu.memory_space<vmem>>) attributes {dimension_semantics = [#tpu.dimension_semantics<parallel>, #tpu.dimension_semantics<arbitrary>], iteration_bounds = array<i64: 3, 2>, scalar_prefetch = 0 : i64, scratch_operands = 1 : i64, tpu.core_type = #tpu.core_type<tc>, window_params = [{transform_indices = @transform_0, window_bounds = array<i64: 8, 256>}, {pipeline_mode = #tpu.pipeline_mode<synchronous>, transform_indices = @transform_1, window_bounds = array<i64: 256, 64>}, {pipeline_mode = #tpu.pipeline_mode<synchronous>, transform_indices = @transform_2, window_bounds = array<i64: 1, 64>}, {pipeline_mode = #tpu.pipeline_mode<synchronous>, transform_indices = @transform_3, window_bounds = array<i64: 64, 32>}, {pipeline_mode = #tpu.pipeline_mode<synchronous>, transform_indices = @transform_4, window_bounds = array<i64: 1, 32>}, {pipeline_mode = #tpu.pipeline_mode<synchronous>, transform_indices = @transform_5, window_bounds = array<i64: 32, 64>}, {pipeline_mode = #tpu.pipeline_mode<synchronous>, transform_indices = @transform_6, window_bounds = array<i64: 1, 64>}, {transform_indices = @transform_7, window_bounds = array<i64: 64, 128>}, {transform_indices = @transform_8, window_bounds = array<i64: 1, 128>}, {transform_indices = @transform_9, window_bounds = array<i64: 8, 128>}]} {
    %c0_i32 = arith.constant 0 : i32
    %0 = arith.cmpi eq, %arg1, %c0_i32 : i32
    %1 = arith.extui %0 : i1 to i32
    %c0_i32_0 = arith.constant 0 : i32
    %2 = arith.cmpi ne, %1, %c0_i32_0 : i32
    scf.if %2 {
      %c0_8 = arith.constant 0 : index
      %c0_9 = arith.constant 0 : index
      %10 = vector.load %arg2[%c0_8, %c0_9] : memref<8x256xbf16, #tpu.memory_space<vmem>>, vector<8x256xbf16>
      %11 = arith.extf %10 : vector<8x256xbf16> to vector<8x256xf32>
      %12 = arith.mulf %11, %11 : vector<8x256xf32>
      %cst_10 = arith.constant dense<0.000000e+00> : vector<8xf32>
      %13 = vector.multi_reduction <add>, %12, %cst_10 [1] : vector<8x256xf32> to vector<8xf32>
      %14 = vector.shape_cast %13 : vector<8xf32> to vector<8x1xf32>
      %cst_11 = arith.constant 1.000000e-24 : f32
      %15 = vector.broadcast %cst_11 : f32 to vector<8x1xf32>
      %16 = arith.maximumf %14, %15 : vector<8x1xf32>
      %17 = math.rsqrt %16 : vector<8x1xf32>
      %18 = arith.truncf %17 : vector<8x1xf32> to vector<8x1xbf16>
      %19 = vector.broadcast %18 : vector<8x1xbf16> to vector<8x256xbf16>
      %20 = arith.mulf %10, %19 : vector<8x256xbf16>
      %c0_12 = arith.constant 0 : index
      %c0_13 = arith.constant 0 : index
      %21 = vector.load %arg3[%c0_12, %c0_13] : memref<256x64xbf16, #tpu.memory_space<vmem>>, vector<256x64xbf16>
      %c0_14 = arith.constant 0 : index
      %c0_15 = arith.constant 0 : index
      %22 = vector.load %arg4[%c0_14, %c0_15] : memref<1x64xf32, #tpu.memory_space<vmem>>, vector<1x64xf32>
      %cst_16 = arith.constant dense<0.000000e+00> : vector<8x64xf32>
      %23 = tpu.matmul %20, %21, %cst_16 {dimension_numbers = #tpu.dot_dimension_numbers<[1], [0], [0], [1], [0, 0, 1, 1], [], []>} : vector<8x256xbf16>, vector<256x64xbf16>, vector<8x64xf32> -> vector<8x64xf32>
      %24 = vector.broadcast %22 : vector<1x64xf32> to vector<8x64xf32>
      %25 = arith.addf %23, %24 : vector<8x64xf32>
      %26 = math.tanh %25 : vector<8x64xf32>
      %27 = arith.truncf %26 : vector<8x64xf32> to vector<8x64xbf16>
      %c0_17 = arith.constant 0 : index
      %c0_18 = arith.constant 0 : index
      %28 = vector.load %arg5[%c0_17, %c0_18] : memref<64x32xbf16, #tpu.memory_space<vmem>>, vector<64x32xbf16>
      %c0_19 = arith.constant 0 : index
      %c0_20 = arith.constant 0 : index
      %29 = vector.load %arg6[%c0_19, %c0_20] : memref<1x32xf32, #tpu.memory_space<vmem>>, vector<1x32xf32>
      %cst_21 = arith.constant dense<0.000000e+00> : vector<8x32xf32>
      %30 = tpu.matmul %27, %28, %cst_21 {dimension_numbers = #tpu.dot_dimension_numbers<[1], [0], [0], [1], [0, 0, 1, 1], [], []>} : vector<8x64xbf16>, vector<64x32xbf16>, vector<8x32xf32> -> vector<8x32xf32>
      %31 = vector.broadcast %29 : vector<1x32xf32> to vector<8x32xf32>
      %32 = arith.addf %30, %31 : vector<8x32xf32>
      %33 = math.tanh %32 : vector<8x32xf32>
      %34 = arith.truncf %33 : vector<8x32xf32> to vector<8x32xbf16>
      %c0_22 = arith.constant 0 : index
      %c0_23 = arith.constant 0 : index
      %35 = vector.load %arg7[%c0_22, %c0_23] : memref<32x64xbf16, #tpu.memory_space<vmem>>, vector<32x64xbf16>
      %c0_24 = arith.constant 0 : index
      %c0_25 = arith.constant 0 : index
      %36 = vector.load %arg8[%c0_24, %c0_25] : memref<1x64xf32, #tpu.memory_space<vmem>>, vector<1x64xf32>
      %cst_26 = arith.constant dense<0.000000e+00> : vector<8x64xf32>
      %37 = tpu.matmul %34, %35, %cst_26 {dimension_numbers = #tpu.dot_dimension_numbers<[1], [0], [0], [1], [0, 0, 1, 1], [], []>} : vector<8x32xbf16>, vector<32x64xbf16>, vector<8x64xf32> -> vector<8x64xf32>
      %38 = vector.broadcast %36 : vector<1x64xf32> to vector<8x64xf32>
      %39 = arith.addf %37, %38 : vector<8x64xf32>
      %40 = math.tanh %39 : vector<8x64xf32>
      %41 = arith.truncf %40 : vector<8x64xf32> to vector<8x64xbf16>
      %c0_27 = arith.constant 0 : index
      %c0_28 = arith.constant 0 : index
      %42 = vector.load %arg12[%c0_27, %c0_28] : memref<8x64xbf16, #tpu.memory_space<vmem>>, vector<8x64xbf16>
      tpu.vector_store %arg12[%c0_27, %c0_28], %41 {strides = array<i32>} : memref<8x64xbf16, #tpu.memory_space<vmem>>, vector<8x64xbf16>,
    } else {
    }
    %c0 = arith.constant 0 : index
    %c0_1 = arith.constant 0 : index
    %3 = vector.load %arg9[%c0, %c0_1] : memref<64x128xbf16, #tpu.memory_space<vmem>>, vector<64x128xbf16>
    %c0_2 = arith.constant 0 : index
    %c0_3 = arith.constant 0 : index
    %4 = vector.load %arg10[%c0_2, %c0_3] : memref<1x128xf32, #tpu.memory_space<vmem>>, vector<1x128xf32>
    %c0_4 = arith.constant 0 : index
    %c0_5 = arith.constant 0 : index
    %5 = vector.load %arg12[%c0_4, %c0_5] : memref<8x64xbf16, #tpu.memory_space<vmem>>, vector<8x64xbf16>
    %cst = arith.constant dense<0.000000e+00> : vector<8x128xf32>
    %6 = tpu.matmul %5, %3, %cst {dimension_numbers = #tpu.dot_dimension_numbers<[1], [0], [0], [1], [0, 0, 1, 1], [], []>} : vector<8x64xbf16>, vector<64x128xbf16>, vector<8x128xf32> -> vector<8x128xf32>
    %7 = vector.broadcast %4 : vector<1x128xf32> to vector<8x128xf32>
    %8 = arith.addf %6, %7 : vector<8x128xf32>
    %c0_6 = arith.constant 0 : index
    %c0_7 = arith.constant 0 : index
    %9 = vector.load %arg11[%c0_6, %c0_7] : memref<8x128xf32, #tpu.memory_space<vmem>>, vector<8x128xf32>
    tpu.vector_store %arg11[%c0_6, %c0_7], %8 {strides = array<i32>} : memref<8x128xf32, #tpu.memory_space<vmem>>, vector<8x128xf32>,
    return
  }
  func.func @transform_0(%arg0: i32, %arg1: i32) -> (i32, i32) {
    %c0_i32 = arith.constant 0 : i32
    %c0_i32_0 = arith.constant 0 : i32
    return %arg0, %c0_i32 : i32, i32
  }
  func.func @transform_1(%arg0: i32, %arg1: i32) -> (i32, i32) {
    %c0_i32 = arith.constant 0 : i32
    %c0_i32_0 = arith.constant 0 : i32
    %c0_i32_1 = arith.constant 0 : i32
    return %c0_i32, %c0_i32_0 : i32, i32
  }
  func.func @transform_2(%arg0: i32, %arg1: i32) -> (i32, i32) {
    %c0_i32 = arith.constant 0 : i32
    %c0_i32_0 = arith.constant 0 : i32
    %c0_i32_1 = arith.constant 0 : i32
    return %c0_i32, %c0_i32_0 : i32, i32
  }
  func.func @transform_3(%arg0: i32, %arg1: i32) -> (i32, i32) {
    %c0_i32 = arith.constant 0 : i32
    %c0_i32_0 = arith.constant 0 : i32
    %c0_i32_1 = arith.constant 0 : i32
    return %c0_i32, %c0_i32_0 : i32, i32
  }
  func.func @transform_4(%arg0: i32, %arg1: i32) -> (i32, i32) {
    %c0_i32 = arith.constant 0 : i32
    %c0_i32_0 = arith.constant 0 : i32
    %c0_i32_1 = arith.constant 0 : i32
    return %c0_i32, %c0_i32_0 : i32, i32
  }
  func.func @transform_5(%arg0: i32, %arg1: i32) -> (i32, i32) {
    %c0_i32 = arith.constant 0 : i32
    %c0_i32_0 = arith.constant 0 : i32
    %c0_i32_1 = arith.constant 0 : i32
    return %c0_i32, %c0_i32_0 : i32, i32
  }
  func.func @transform_6(%arg0: i32, %arg1: i32) -> (i32, i32) {
    %c0_i32 = arith.constant 0 : i32
    %c0_i32_0 = arith.constant 0 : i32
    %c0_i32_1 = arith.constant 0 : i32
    return %c0_i32, %c0_i32_0 : i32, i32
  }
  func.func @transform_7(%arg0: i32, %arg1: i32) -> (i32, i32) {
    %c0_i32 = arith.constant 0 : i32
    %c0_i32_0 = arith.constant 0 : i32
    return %c0_i32, %arg1 : i32, i32
  }
  func.func @transform_8(%arg0: i32, %arg1: i32) -> (i32, i32) {
    %c0_i32 = arith.constant 0 : i32
    %c0_i32_0 = arith.constant 0 : i32
    return %c0_i32, %arg1 : i32, i32
  }
  func.func @transform_9(%arg0: i32, %arg1: i32) -> (i32, i32) {
    %c0_i32 = arith.constant 0 : i32
    return %arg0, %arg1 : i32, i32
  }
}

module attributes {stable_mosaic.version = 11 : i64} {
  func.func @kernel(%arg0: i32, %arg1: i32, %arg2: memref<8x256xbf16, #tpu.memory_space<vmem>>, %arg3: memref<256x64xbf16, #tpu.memory_space<vmem>>, %arg4: memref<1x64xf32, #tpu.memory_space<vmem>>, %arg5: memref<64x32xbf16, #tpu.memory_space<vmem>>, %arg6: memref<1x32xf32, #tpu.memory_space<vmem>>, %arg7: memref<32x64xbf16, #tpu.memory_space<vmem>>, %arg8: memref<1x64xf32, #tpu.memory_space<vmem>>, %arg9: memref<64x128xbf16, #tpu.memory_space<vmem>>, %arg10: memref<1x128xf32, #tpu.memory_space<vmem>>, %arg11: memref<8x128xf32, #tpu.memory_space<vmem>>, %arg12: memref<8x64xbf16, #tpu.memory_space<vmem>>) attributes {dimension_semantics = [#tpu.dimension_semantics<parallel>, #tpu.dimension_semantics<arbitrary>], iteration_bounds = array<i64: 3, 2>, scalar_prefetch = 0 : i64, scratch_operands = 1 : i64, tpu.core_type = #tpu.core_type<tc>, window_params = [{transform_indices = @transform_0, window_bounds = array<i64: 8, 256>}, {pipeline_mode = #tpu.pipeline_mode<synchronous>, transform_indices = @transform_1, window_bounds = array<i64: 256, 64>}, {pipeline_mode = #tpu.pipeline_mode<synchronous>, transform_indices = @transform_2, window_bounds = array<i64: 1, 64>}, {pipeline_mode = #tpu.pipeline_mode<synchronous>, transform_indices = @transform_3, window_bounds = array<i64: 64, 32>}, {pipeline_mode = #tpu.pipeline_mode<synchronous>, transform_indices = @transform_4, window_bounds = array<i64: 1, 32>}, {pipeline_mode = #tpu.pipeline_mode<synchronous>, transform_indices = @transform_5, window_bounds = array<i64: 32, 64>}, {pipeline_mode = #tpu.pipeline_mode<synchronous>, transform_indices = @transform_6, window_bounds = array<i64: 1, 64>}, {transform_indices = @transform_7, window_bounds = array<i64: 64, 128>}, {transform_indices = @transform_8, window_bounds = array<i64: 1, 128>}, {transform_indices = @transform_9, window_bounds = array<i64: 8, 128>}]} {
    %c0_i32 = arith.constant 0 : i32
    %0 = arith.cmpi eq, %arg1, %c0_i32 : i32
    %1 = arith.extui %0 : i1 to i32
    %c0_i32_0 = arith.constant 0 : i32
    %2 = arith.cmpi ne, %1, %c0_i32_0 : i32
    scf.if %2 {
      %c0_8 = arith.constant 0 : index
      %c0_9 = arith.constant 0 : index
      %10 = vector.load %arg2[%c0_8, %c0_9] : memref<8x256xbf16, #tpu.memory_space<vmem>>, vector<8x256xbf16>
      %11 = arith.extf %10 : vector<8x256xbf16> to vector<8x256xf32>
      %12 = arith.mulf %11, %11 : vector<8x256xf32>
      %cst_10 = arith.constant dense<0.000000e+00> : vector<8xf32>
      %13 = vector.multi_reduction <add>, %12, %cst_10 [1] : vector<8x256xf32> to vector<8xf32>
      %14 = vector.shape_cast %13 : vector<8xf32> to vector<8x1xf32>
      %cst_11 = arith.constant 1.000000e-24 : f32
      %15 = vector.broadcast %cst_11 : f32 to vector<8x1xf32>
      %16 = arith.maximumf %14, %15 : vector<8x1xf32>
      %17 = math.rsqrt %16 : vector<8x1xf32>
      %18 = arith.truncf %17 : vector<8x1xf32> to vector<8x1xbf16>
      %19 = vector.broadcast %18 : vector<8x1xbf16> to vector<8x256xbf16>
      %20 = arith.mulf %10, %19 : vector<8x256xbf16>
      %c0_12 = arith.constant 0 : index
      %c0_13 = arith.constant 0 : index
      %21 = vector.load %arg3[%c0_12, %c0_13] : memref<256x64xbf16, #tpu.memory_space<vmem>>, vector<256x64xbf16>
      %c0_14 = arith.constant 0 : index
      %c0_15 = arith.constant 0 : index
      %22 = vector.load %arg4[%c0_14, %c0_15] : memref<1x64xf32, #tpu.memory_space<vmem>>, vector<1x64xf32>
      %cst_16 = arith.constant dense<0.000000e+00> : vector<8x64xf32>
      %23 = tpu.matmul %20, %21, %cst_16 {dimension_numbers = #tpu.dot_dimension_numbers<[1], [0], [0], [1], [0, 0, 1, 1], [], []>} : vector<8x256xbf16>, vector<256x64xbf16>, vector<8x64xf32> -> vector<8x64xf32>
      %24 = vector.broadcast %22 : vector<1x64xf32> to vector<8x64xf32>
      %25 = arith.addf %23, %24 : vector<8x64xf32>
      %26 = math.tanh %25 : vector<8x64xf32>
      %27 = arith.truncf %26 : vector<8x64xf32> to vector<8x64xbf16>
      %c0_17 = arith.constant 0 : index
      %c0_18 = arith.constant 0 : index
      %28 = vector.load %arg5[%c0_17, %c0_18] : memref<64x32xbf16, #tpu.memory_space<vmem>>, vector<64x32xbf16>
      %c0_19 = arith.constant 0 : index
      %c0_20 = arith.constant 0 : index
      %29 = vector.load %arg6[%c0_19, %c0_20] : memref<1x32xf32, #tpu.memory_space<vmem>>, vector<1x32xf32>
      %cst_21 = arith.constant dense<0.000000e+00> : vector<8x32xf32>
      %30 = tpu.matmul %27, %28, %cst_21 {dimension_numbers = #tpu.dot_dimension_numbers<[1], [0], [0], [1], [0, 0, 1, 1], [], []>} : vector<8x64xbf16>, vector<64x32xbf16>, vector<8x32xf32> -> vector<8x32xf32>
      %31 = vector.broadcast %29 : vector<1x32xf32> to vector<8x32xf32>
      %32 = arith.addf %30, %31 : vector<8x32xf32>
      %33 = math.tanh %32 : vector<8x32xf32>
      %34 = arith.truncf %33 : vector<8x32xf32> to vector<8x32xbf16>
      %c0_22 = arith.constant 0 : index
      %c0_23 = arith.constant 0 : index
      %35 = vector.load %arg7[%c0_22, %c0_23] : memref<32x64xbf16, #tpu.memory_space<vmem>>, vector<32x64xbf16>
      %c0_24 = arith.constant 0 : index
      %c0_25 = arith.constant 0 : index
      %36 = vector.load %arg8[%c0_24, %c0_25] : memref<1x64xf32, #tpu.memory_space<vmem>>, vector<1x64xf32>
      %cst_26 = arith.constant dense<0.000000e+00> : vector<8x64xf32>
      %37 = tpu.matmul %34, %35, %cst_26 {dimension_numbers = #tpu.dot_dimension_numbers<[1], [0], [0], [1], [0, 0, 1, 1], [], []>} : vector<8x32xbf16>, vector<32x64xbf16>, vector<8x64xf32> -> vector<8x64xf32>
      %38 = vector.broadcast %36 : vector<1x64xf32> to vector<8x64xf32>
      %39 = arith.addf %37, %38 : vector<8x64xf32>
      %40 = math.tanh %39 : vector<8x64xf32>
      %41 = arith.truncf %40 : vector<8x64xf32> to vector<8x64xbf16>
      %c0_27 = arith.constant 0 : index
      %c0_28 = arith.constant 0 : index
      %42 = vector.load %arg12[%c0_27, %c0_28] : memref<8x64xbf16, #tpu.memory_space<vmem>>, vector<8x64xbf16>
      tpu.vector_store %arg12[%c0_27, %c0_28], %41 {strides = array<i32>} : memref<8x64xbf16, #tpu.memory_space<vmem>>, vector<8x64xbf16>,
    } else {
    }
    %c0 = arith.constant 0 : index
    %c0_1 = arith.constant 0 : index
    %3 = vector.load %arg9[%c0, %c0_1] : memref<64x128xbf16, #tpu.memory_space<vmem>>, vector<64x128xbf16>
    %c0_2 = arith.constant 0 : index
    %c0_3 = arith.constant 0 : index
    %4 = vector.load %arg10[%c0_2, %c0_3] : memref<1x128xf32, #tpu.memory_space<vmem>>, vector<1x128xf32>
    %c0_4 = arith.constant 0 : index
    %c0_5 = arith.constant 0 : index
    %5 = vector.load %arg12[%c0_4, %c0_5] : memref<8x64xbf16, #tpu.memory_space<vmem>>, vector<8x64xbf16>
    %cst = arith.constant dense<0.000000e+00> : vector<8x128xf32>
    %6 = tpu.matmul %5, %3, %cst {dimension_numbers = #tpu.dot_dimension_numbers<[1], [0], [0], [1], [0, 0, 1, 1], [], []>} : vector<8x64xbf16>, vector<64x128xbf16>, vector<8x128xf32> -> vector<8x128xf32>
    %7 = vector.broadcast %4 : vector<1x128xf32> to vector<8x128xf32>
    %8 = arith.addf %6, %7 : vector<8x128xf32>
    %c0_6 = arith.constant 0 : index
    %c0_7 = arith.constant 0 : index
    %9 = vector.load %arg11[%c0_6, %c0_7] : memref<8x128xf32, #tpu.memory_space<vmem>>, vector<8x128xf32>
    tpu.vector_store %arg11[%c0_6, %c0_7], %8 {strides = array<i32>} : memref<8x128xf32, #tpu.memory_space<vmem>>, vector<8x128xf32>,
    return
  }
  func.func @transform_0(%arg0: i32, %arg1: i32) -> (i32, i32) {
    %c0_i32 = arith.constant 0 : i32
    %c0_i32_0 = arith.constant 0 : i32
    return %arg0, %c0_i32 : i32, i32
  }
  func.func @transform_1(%arg0: i32, %arg1: i32) -> (i32, i32) {
    %c0_i32 = arith.constant 0 : i32
    %c0_i32_0 = arith.constant 0 : i32
    %c0_i32_1 = arith.constant 0 : i32
    return %c0_i32, %c0_i32_0 : i32, i32
  }
  func.func @transform_2(%arg0: i32, %arg1: i32) -> (i32, i32) {
    %c0_i32 = arith.constant 0 : i32
    %c0_i32_0 = arith.constant 0 : i32
    %c0_i32_1 = arith.constant 0 : i32
    return %c0_i32, %c0_i32_0 : i32, i32
  }
  func.func @transform_3(%arg0: i32, %arg1: i32) -> (i32, i32) {
    %c0_i32 = arith.constant 0 : i32
    %c0_i32_0 = arith.constant 0 : i32
    %c0_i32_1 = arith.constant 0 : i32
    return %c0_i32, %c0_i32_0 : i32, i32
  }
  func.func @transform_4(%arg0: i32, %arg1: i32) -> (i32, i32) {
    %c0_i32 = arith.constant 0 : i32
    %c0_i32_0 = arith.constant 0 : i32
    %c0_i32_1 = arith.constant 0 : i32
    return %c0_i32, %c0_i32_0 : i32, i32
  }
  func.func @transform_5(%arg0: i32, %arg1: i32) -> (i32, i32) {
    %c0_i32 = arith.constant 0 : i32
    %c0_i32_0 = arith.constant 0 : i32
    %c0_i32_1 = arith.constant 0 : i32
    return %c0_i32, %c0_i32_0 : i32, i32
  }
  func.func @transform_6(%arg0: i32, %arg1: i32) -> (i32, i32) {
    %c0_i32 = arith.constant 0 : i32
    %c0_i32_0 = arith.constant 0 : i32
    %c0_i32_1 = arith.constant 0 : i32
    return %c0_i32, %c0_i32_0 : i32, i32
  }
  func.func @transform_7(%arg0: i32, %arg1: i32) -> (i32, i32) {
    %c0_i32 = arith.constant 0 : i32
    %c0_i32_0 = arith.constant 0 : i32
    return %c0_i32, %arg1 : i32, i32
  }
  func.func @transform_8(%arg0: i32, %arg1: i32) -> (i32, i32) {
    %c0_i32 = arith.constant 0 : i32
    %c0_i32_0 = arith.constant 0 : i32
    return %c0_i32, %arg1 : i32, i32
  }
  func.func @transform_9(%arg0: i32, %arg1: i32) -> (i32, i32) {
    %c0_i32 = arith.constant 0 : i32
    return %arg0, %arg1 : i32, i32
  }
}

</mosaic_0001>

<llo_original>
// kernel: tpu_custom_call.1
$region0: #{tpu_custom_call.1}
  #allocation0 [shape = 'u32[]', space=smem, size = 0x4, offset = 0x4, fixed_abs, tag = 'smem constant byte address 0x4 - core index']
  #allocation1 [shape = 'u32[72,128]{1,0:T(1,128)}', space=vmem, size = 0x9000, scoped, tag = 'internal scratch']
  #allocation2 [shape = 'bf16[8,64]{1,0:T(8,128)(2,1)}', space=vmem, size = 0x800, scoped, tag = 'scratch operand']
  %s0 = inlined_call_operand.vmem [shape: bf16[24,256], index: 0, kind: input, shape index: {}]
  %s1 = inlined_call_operand.vmem [shape: bf16[256,64], index: 1, kind: input, shape index: {}]
  %s2 = inlined_call_operand.vmem [shape: f32[1,64], index: 2, kind: input, shape index: {}]
  %s3 = inlined_call_operand.vmem [shape: bf16[64,32], index: 3, kind: input, shape index: {}]
  %s4 = inlined_call_operand.vmem [shape: f32[1,32], index: 4, kind: input, shape index: {}]
  %s5 = inlined_call_operand.vmem [shape: bf16[32,64], index: 5, kind: input, shape index: {}]
  %s6 = inlined_call_operand.vmem [shape: f32[1,64], index: 6, kind: input, shape index: {}]
  %s7 = inlined_call_operand.vmem [shape: bf16[64,256], index: 7, kind: input, shape index: {}]
  %s8 = inlined_call_operand.vmem [shape: f32[1,256], index: 8, kind: input, shape index: {}]
  %s9 = inlined_call_operand.hbm [shape: f32[24,256], index: 9, kind: output, shape index: {}]
  %s10 = sld [smem:[#allocation0]]
  $region114: #{tpu_custom_call.1} parent=0
    _
  %s12 = ssub.s32 1, %s10
  %s13 = scalar_select 0, %s12, %s10
  $region1: #{tpu_custom_call.1} parent=0
    #allocation3 [shape = 'u8[32768]{0}', space=vmem, size = 0x8000, scoped, tag = 'input window, operand 7']
    #allocation4 [shape = 'u8[8192]{0}', space=vmem, size = 0x2000, scoped, tag = 'output window, operand 0']
    #allocation5 [shape = 's32[2]{0}', space=sflag, size = 0x8, scoped, tag = 'scoped memory for tpu_custom_call.1']
    %14 = vsyncpa [#allocation5], 0
    %s15 = scalar_lea.sflag [#allocation5], 1
    %16 = vsyncpa %s15, 0
    loop: start=0, step=1, limit=8
    $region2: #{tpu_custom_call.1} parent=1 // loop_pre_header
      _
    $region3: #{tpu_custom_call.1} parent=1 // loop_header
      %s18 = sphi 0, %s22
      %p19 = scmp.ge.s32.totalorder %s18, 8
      %s25 = sphi 0, %s37
      %s26 = sphi 0, %s33
      %s27 = sphi 0, %s25
      %s28 = sphi 0, %s26
      %s29 = sphi 0, %s27
      %s30 = sphi 0, %s28
      %s40 = sphi 0, %s42
      %s43 = sphi 0, %s40
      %s44 = sphi 0, %s43
      %s60 = sphi 0, %s44
      %s64 = sphi 0, %s64
      %s66 = sphi 0, %s64
      %s67 = sphi 0, %s66
      %s81 = sphi 0, %s67
      %s85 = sphi 0, %s85
      %s87 = sphi 0, %s85
      %s88 = sphi 0, %s87
      %s102 = sphi 0, %s88
      %s106 = sphi 0, %s106
      %s108 = sphi 0, %s106
      %s109 = sphi 0, %s108
      %s123 = sphi 0, %s109
      %s127 = sphi 0, %s127
      %s129 = sphi 0, %s127
      %s130 = sphi 0, %s129
      %s144 = sphi 0, %s130
      %s148 = sphi 0, %s148
      %s150 = sphi 0, %s148
      %s151 = sphi 0, %s150
      %s165 = sphi 0, %s151
      %s169 = sphi 0, %s169
      %s171 = sphi 0, %s169
      %s172 = sphi 0, %s171
      %s186 = sphi 0, %s172
      %s192 = sphi 0, %s194
      %s195 = sphi 0, %s192
      %s196 = sphi 0, %s195
      %s212 = sphi 0, %s196
      %s218 = sphi 0, %s220
      %s221 = sphi 0, %s218
      %s222 = sphi 0, %s221
      %s238 = sphi 0, %s222
      %s246 = sphi 0, %s248
      %s249 = sphi 0, %s246
      %s250 = sphi 0, %s249
      %s266 = sphi 0, %s250
    $region4: #{tpu_custom_call.1} parent=1 // loop_header_branch
      %21 = sbr.rel (%p19) target = $region8
    $region5: #{tpu_custom_call.1} parent=1 // loop_body
      %s23 = ssub.s32 %s18, 1
      %s24 = ssub.s32 %s18, 2
      %s31 = sadd.s32 1, %s26
      %p32 = scmp.ge.s32.totalorder %s31, 2
      %s33 = scalar_select %p32, 0, %s31
      %s34 = sadd.s32 1, %s25
      %s35 = scalar_select %p32, %s34, %s25
      %p36 = scmp.ge.s32.totalorder %s35, 3
      %s37 = scalar_select %p36, 0, %s35
      %s38 = ssub.s32 %s25, %s37
      %p39 = scmp.eq.s32.totalorder %s38, 0
      %s41 = sadd.s32 %s40, 1
      %s42 = scalar_select %p39, %s40, %s41
      %p45 = pneg %p39
      %p46 = scmp.eq.s32.totalorder %s18, 5
      %p47 = por %p45, %p46
      %p48 = scmp.ne.s32.totalorder %s40, %s43
      %p49 = scmp.eq.s32.totalorder %s18, 0
      %p50 = por %p48, %p49
      %p51 = scmp.ne.s32.totalorder %s40, %s43
      %p52 = scmp.eq.s32.totalorder %s23, 5
      %p53 = por %p51, %p52
      %p54 = scmp.ne.s32.totalorder %s43, %s44
      %p55 = scmp.eq.s32.totalorder %s23, 0
      %p56 = por %p54, %p55
      %p57 = scmp.ne.s32.totalorder %s43, %s44
      %p58 = scmp.eq.s32.totalorder %s24, 5
      %p59 = por %p57, %p58
      %p61 = scmp.ne.s32.totalorder %s44, %s60
      %p62 = scmp.eq.s32.totalorder %s24, 0
      %p63 = por %p61, %p62
      %s65 = sadd.s32 %s64, 1
      %p68 = scmp.eq.s32.totalorder %s18, 5
      %p69 = scmp.ne.s32.totalorder %s64, %s66
      %p70 = scmp.eq.s32.totalorder %s18, 0
      %p71 = por %p69, %p70
      %p72 = scmp.ne.s32.totalorder %s64, %s66
      %p73 = scmp.eq.s32.totalorder %s23, 5
      %p74 = por %p72, %p73
      %p75 = scmp.ne.s32.totalorder %s66, %s67
      %p76 = scmp.eq.s32.totalorder %s23, 0
      %p77 = por %p75, %p76
      %p78 = scmp.ne.s32.totalorder %s66, %s67
      %p79 = scmp.eq.s32.totalorder %s24, 5
      %p80 = por %p78, %p79
      %p82 = scmp.ne.s32.totalorder %s67, %s81
      %p83 = scmp.eq.s32.totalorder %s24, 0
      %p84 = por %p82, %p83
      %s86 = sadd.s32 %s85, 1
      %p89 = scmp.eq.s32.totalorder %s18, 5
      %p90 = scmp.ne.s32.totalorder %s85, %s87
      %p91 = scmp.eq.s32.totalorder %s18, 0
      %p92 = por %p90, %p91
      %p93 = scmp.ne.s32.totalorder %s85, %s87
      %p94 = scmp.eq.s32.totalorder %s23, 5
      %p95 = por %p93, %p94
      %p96 = scmp.ne.s32.totalorder %s87, %s88
      %p97 = scmp.eq.s32.totalorder %s23, 0
      %p98 = por %p96, %p97
      %p99 = scmp.ne.s32.totalorder %s87, %s88
      %p100 = scmp.eq.s32.totalorder %s24, 5
      %p101 = por %p99, %p100
      %p103 = scmp.ne.s32.totalorder %s88, %s102
      %p104 = scmp.eq.s32.totalorder %s24, 0
      %p105 = por %p103, %p104
      %s107 = sadd.s32 %s106, 1
      %p110 = scmp.eq.s32.totalorder %s18, 5
      %p111 = scmp.ne.s32.totalorder %s106, %s108
      %p112 = scmp.eq.s32.totalorder %s18, 0
      %p113 = por %p111, %p112
      %p114 = scmp.ne.s32.totalorder %s106, %s108
      %p115 = scmp.eq.s32.totalorder %s23, 5
      %p116 = por %p114, %p115
      %p117 = scmp.ne.s32.totalorder %s108, %s109
      %p118 = scmp.eq.s32.totalorder %s23, 0
      %p119 = por %p117, %p118
      %p120 = scmp.ne.s32.totalorder %s108, %s109
      %p121 = scmp.eq.s32.totalorder %s24, 5
      %p122 = por %p120, %p121
      %p124 = scmp.ne.s32.totalorder %s109, %s123
      %p125 = scmp.eq.s32.totalorder %s24, 0
      %p126 = por %p124, %p125
      %s128 = sadd.s32 %s127, 1
      %p131 = scmp.eq.s32.totalorder %s18, 5
      %p132 = scmp.ne.s32.totalorder %s127, %s129
      %p133 = scmp.eq.s32.totalorder %s18, 0
      %p134 = por %p132, %p133
      %p135 = scmp.ne.s32.totalorder %s127, %s129
      %p136 = scmp.eq.s32.totalorder %s23, 5
      %p137 = por %p135, %p136
      %p138 = scmp.ne.s32.totalorder %s129, %s130
      %p139 = scmp.eq.s32.totalorder %s23, 0
      %p140 = por %p138, %p139
      %p141 = scmp.ne.s32.totalorder %s129, %s130
      %p142 = scmp.eq.s32.totalorder %s24, 5
      %p143 = por %p141, %p142
      %p145 = scmp.ne.s32.totalorder %s130, %s144
      %p146 = scmp.eq.s32.totalorder %s24, 0
      %p147 = por %p145, %p146
      %s149 = sadd.s32 %s148, 1
      %p152 = scmp.eq.s32.totalorder %s18, 5
      %p153 = scmp.ne.s32.totalorder %s148, %s150
      %p154 = scmp.eq.s32.totalorder %s18, 0
      %p155 = por %p153, %p154
      %p156 = scmp.ne.s32.totalorder %s148, %s150
      %p157 = scmp.eq.s32.totalorder %s23, 5
      %p158 = por %p156, %p157
      %p159 = scmp.ne.s32.totalorder %s150, %s151
      %p160 = scmp.eq.s32.totalorder %s23, 0
      %p161 = por %p159, %p160
      %p162 = scmp.ne.s32.totalorder %s150, %s151
      %p163 = scmp.eq.s32.totalorder %s24, 5
      %p164 = por %p162, %p163
      %p166 = scmp.ne.s32.totalorder %s151, %s165
      %p167 = scmp.eq.s32.totalorder %s24, 0
      %p168 = por %p166, %p167
      %s170 = sadd.s32 %s169, 1
      %p173 = scmp.eq.s32.totalorder %s18, 5
      %p174 = scmp.ne.s32.totalorder %s169, %s171
      %p175 = scmp.eq.s32.totalorder %s18, 0
      %p176 = por %p174, %p175
      %p177 = scmp.ne.s32.totalorder %s169, %s171
      %p178 = scmp.eq.s32.totalorder %s23, 5
      %p179 = por %p177, %p178
      %p180 = scmp.ne.s32.totalorder %s171, %s172
      %p181 = scmp.eq.s32.totalorder %s23, 0
      %p182 = por %p180, %p181
      %p183 = scmp.ne.s32.totalorder %s171, %s172
      %p184 = scmp.eq.s32.totalorder %s24, 5
      %p185 = por %p183, %p184
      %p187 = scmp.ne.s32.totalorder %s172, %s186
      %p188 = scmp.eq.s32.totalorder %s24, 0
      %p189 = por %p187, %p188
      %s190 = ssub.s32 %s26, %s33
      %p191 = scmp.eq.s32.totalorder %s190, 0
      %s193 = sadd.s32 %s192, 1
      %s194 = scalar_select %p191, %s192, %s193
      %p197 = pneg %p191
      %p198 = scmp.eq.s32.totalorder %s18, 5
      %p199 = por %p197, %p198
      %p200 = scmp.ne.s32.totalorder %s192, %s195
      %p201 = scmp.eq.s32.totalorder %s18, 0
      %p202 = por %p200, %p201
      %p203 = scmp.ne.s32.totalorder %s192, %s195
      %p204 = scmp.eq.s32.totalorder %s23, 5
      %p205 = por %p203, %p204
      %p206 = scmp.ne.s32.totalorder %s195, %s196
      %p207 = scmp.eq.s32.totalorder %s23, 0
      %p208 = por %p206, %p207
      %p209 = scmp.ne.s32.totalorder %s195, %s196
      %p210 = scmp.eq.s32.totalorder %s24, 5
      %p211 = por %p209, %p210
      %p213 = scmp.ne.s32.totalorder %s196, %s212
      %p214 = scmp.eq.s32.totalorder %s24, 0
      %p215 = por %p213, %p214
      %s216 = ssub.s32 %s26, %s33
      %p217 = scmp.eq.s32.totalorder %s216, 0
      %s219 = sadd.s32 %s218, 1
      %s220 = scalar_select %p217, %s218, %s219
      %p223 = pneg %p217
      %p224 = scmp.eq.s32.totalorder %s18, 5
      %p225 = por %p223, %p224
      %p226 = scmp.ne.s32.totalorder %s218, %s221
      %p227 = scmp.eq.s32.totalorder %s18, 0
      %p228 = por %p226, %p227
      %p229 = scmp.ne.s32.totalorder %s218, %s221
      %p230 = scmp.eq.s32.totalorder %s23, 5
      %p231 = por %p229, %p230
      %p232 = scmp.ne.s32.totalorder %s221, %s222
      %p233 = scmp.eq.s32.totalorder %s23, 0
      %p234 = por %p232, %p233
      %p235 = scmp.ne.s32.totalorder %s221, %s222
      %p236 = scmp.eq.s32.totalorder %s24, 5
      %p237 = por %p235, %p236
      %p239 = scmp.ne.s32.totalorder %s222, %s238
      %p240 = scmp.eq.s32.totalorder %s24, 0
      %p241 = por %p239, %p240
      %s242 = ssub.s32 %s25, %s37
      %s243 = ssub.s32 %s26, %s33
      %s244 = sor.u32 %s242, %s243
      %p245 = scmp.eq.s32.totalorder %s244, 0
      %s247 = sadd.s32 %s246, 1
      %s248 = scalar_select %p245, %s246, %s247
      %p251 = pneg %p245
      %p252 = scmp.eq.s32.totalorder %s18, 5
      %p253 = por %p251, %p252
      %p254 = scmp.ne.s32.totalorder %s246, %s249
      %p255 = scmp.eq.s32.totalorder %s18, 0
      %p256 = por %p254, %p255
      %p257 = scmp.ne.s32.totalorder %s246, %s249
      %p258 = scmp.eq.s32.totalorder %s23, 5
      %p259 = por %p257, %p258
      %p260 = scmp.ne.s32.totalorder %s249, %s250
      %p261 = scmp.eq.s32.totalorder %s23, 0
      %p262 = por %p260, %p261
      %p263 = scmp.ne.s32.totalorder %s249, %s250
      %p264 = scmp.eq.s32.totalorder %s24, 5
      %p265 = por %p263, %p264
      %p267 = scmp.ne.s32.totalorder %s250, %s266
      %p268 = scmp.eq.s32.totalorder %s24, 0
      %p269 = por %p267, %p268
      %p270 = scmp.le.s32.totalorder 1, %s18
      %p271 = scmp.lt.s32.totalorder %s18, 7
      %p272 = pnand %p270, %p271
      %p273 = pneg %p272
      // Predicated region
      $region9: #{tpu_custom_call.1} parent=5 // pred_check
        _
      $region10: #{tpu_custom_call.1} parent=5 // pred_check_branch
        %275 = sbr.rel (%p272) target = $region12
      $region11: #{tpu_custom_call.1} parent=5 // pred_region
        %s276 = ssub.s32 %s18, 1
        // Predicated region
        $region13: #{tpu_custom_call.1} parent=11 // pred_check
          %p277 = pneg %p77
        $region14: #{tpu_custom_call.1} parent=11 // pred_check_branch
          %279 = sbr.rel (%p277) target = $region16
        $region15: #{tpu_custom_call.1} parent=11 // pred_region
          _
        $region16: #{tpu_custom_call.1} parent=11 // pred_fallthru
          _
        // Predicated region
        $region17: #{tpu_custom_call.1} parent=11 // pred_check
          %p280 = pneg %p98
        $region18: #{tpu_custom_call.1} parent=11 // pred_check_branch
          %282 = sbr.rel (%p280) target = $region20
        $region19: #{tpu_custom_call.1} parent=11 // pred_region
          _
        $region20: #{tpu_custom_call.1} parent=11 // pred_fallthru
          _
        // Predicated region
        $region21: #{tpu_custom_call.1} parent=11 // pred_check
          %p283 = pneg %p119
        $region22: #{tpu_custom_call.1} parent=11 // pred_check_branch
          %285 = sbr.rel (%p283) target = $region24
        $region23: #{tpu_custom_call.1} parent=11 // pred_region
          _
        $region24: #{tpu_custom_call.1} parent=11 // pred_fallthru
          _
        // Predicated region
        $region25: #{tpu_custom_call.1} parent=11 // pred_check
          %p286 = pneg %p140
        $region26: #{tpu_custom_call.1} parent=11 // pred_check_branch
          %288 = sbr.rel (%p286) target = $region28
        $region27: #{tpu_custom_call.1} parent=11 // pred_region
          _
        $region28: #{tpu_custom_call.1} parent=11 // pred_fallthru
          _
        // Predicated region
        $region29: #{tpu_custom_call.1} parent=11 // pred_check
          %p289 = pneg %p161
        $region30: #{tpu_custom_call.1} parent=11 // pred_check_branch
          %291 = sbr.rel (%p289) target = $region32
        $region31: #{tpu_custom_call.1} parent=11 // pred_region
          _
        $region32: #{tpu_custom_call.1} parent=11 // pred_fallthru
          _
        // Predicated region
        $region33: #{tpu_custom_call.1} parent=11 // pred_check
          %p292 = pneg %p182
        $region34: #{tpu_custom_call.1} parent=11 // pred_check_branch
          %294 = sbr.rel (%p292) target = $region36
        $region35: #{tpu_custom_call.1} parent=11 // pred_region
          _
        $region36: #{tpu_custom_call.1} parent=11 // pred_fallthru
          _
      $region12: #{tpu_custom_call.1} parent=5 // pred_fallthru
        _
      %p295 = scmp.lt.s32.totalorder %s18, 6
      // Predicated region
      $region37: #{tpu_custom_call.1} parent=5 // pred_check
        %p296 = pneg %p295
      $region38: #{tpu_custom_call.1} parent=5 // pred_check_branch
        %298 = sbr.rel (%p296) target = $region40
      $region39: #{tpu_custom_call.1} parent=5 // pred_region
        // Predicated region
        $region41: #{tpu_custom_call.1} parent=39 // pred_check
          %p299 = pneg %p50
        $region42: #{tpu_custom_call.1} parent=39 // pred_check_branch
          %301 = sbr.rel (%p299) target = $region44
        $region43: #{tpu_custom_call.1} parent=39 // pred_region
          %p302 = scmp.lt.s32.totalorder %s25, 2
          %s303 = scalar_select %p302, %s25, 2
          %s304 = smul.addr %s303, 2
          %s305 = smul.addr %s304, 4
          %s306 = scalar_lea.vmem %s0, %s305
        $region44: #{tpu_custom_call.1} parent=39 // pred_fallthru
          _
        // Predicated region
        $region45: #{tpu_custom_call.1} parent=39 // pred_check
          %p307 = pneg %p202
        $region46: #{tpu_custom_call.1} parent=39 // pred_check_branch
          %309 = sbr.rel (%p307) target = $region48
        $region47: #{tpu_custom_call.1} parent=39 // pred_region
          %s310 = sand.u32 %s192, 1
          %s311 = sand.u32 %s192, 1
          %s312 = smul.addr %s311, 32
          %s313 = scalar_lea.vmem [#allocation3], %s312
          %s314 = smul.addr %s26, 4
          %s315 = scalar_lea.vmem %s7, %s314
          // Predicated region
          $region49: #{tpu_custom_call.1} parent=47 // pred_check
            _
          $region50: #{tpu_custom_call.1} parent=47 // pred_check_branch
            %317 = sbr.rel (0) target = $region52
          $region51: #{tpu_custom_call.1} parent=47 // pred_region
            // Predicated region
            $region53: #{tpu_custom_call.1} parent=51 // pred_check
              _
            $region54: #{tpu_custom_call.1} parent=51 // pred_check_branch
              %319 = sbr.rel target = $region56
            $region55: #{tpu_custom_call.1} parent=51 // pred_region
              // Predicated region
              $region68: #{tpu_custom_call.1} parent=55 // pred_check
                _
              $region69: #{tpu_custom_call.1} parent=55 // pred_check_branch
                %349 = sbr.rel (0) target = $region71
              $region70: #{tpu_custom_call.1} parent=55 // pred_region
                loop: start=0, step=1, limit=1
                $region72: #{tpu_custom_call.1} parent=70 // loop_pre_header
                  _
                $region73: #{tpu_custom_call.1} parent=70 // loop_header
                  %s351 = sphi 0, %s355
                  %p352 = scmp.ge.s32.totalorder %s351, 1
                  %s356 = sphi %s315, %s315
                  %s357 = sphi %s313, %s313
                $region74: #{tpu_custom_call.1} parent=70 // loop_header_branch
                  %354 = sbr.rel (%p352) target = $region78
                $region75: #{tpu_custom_call.1} parent=70 // loop_body
                  _
                $region76: #{tpu_custom_call.1} parent=70 // loop_footer
                  %s355 = sadd.s32 1, %s351
                $region77: #{tpu_custom_call.1} parent=70 // loop_footer_branch
                  %350 = sbr.rel target = $region73
                $region78: #{tpu_custom_call.1} parent=70 // loop_exit
                  _
                %s359 = ssub.s32 16, 1
                loop: start=0, step=1, limit=1
                $region79: #{tpu_custom_call.1} parent=70 // loop_pre_header
                  _
                $region80: #{tpu_custom_call.1} parent=70 // loop_header
                  %s361 = sphi 0, %s365
                  %p362 = scmp.ge.s32.totalorder %s361, 1
                  %s366 = sphi %s315, %s315
                  %s367 = sphi %s313, %s313
                $region81: #{tpu_custom_call.1} parent=70 // loop_header_branch
                  %364 = sbr.rel (%p362) target = $region85
                $region82: #{tpu_custom_call.1} parent=70 // loop_body
                  %v368 = vld [vmem:[%s366] sm:%s359]
                  %369 = vst [vmem:[%s367] sm:%s359] %v368
                  %v370 = vld [vmem:[%s366 + $0x8] sm:%s359]
                  %371 = vst [vmem:[%s367 + $0x4] sm:%s359] %v370
                  %v372 = vld [vmem:[%s366 + $0x10] sm:%s359]
                  %373 = vst [vmem:[%s367 + $0x8] sm:%s359] %v372
                  %v374 = vld [vmem:[%s366 + $0x18] sm:%s359]
                  %375 = vst [vmem:[%s367 + $0xc] sm:%s359] %v374
                  %v376 = vld [vmem:[%s366 + $0x20] sm:%s359]
                  %377 = vst [vmem:[%s367 + $0x10] sm:%s359] %v376
                  %v378 = vld [vmem:[%s366 + $0x28] sm:%s359]
                  %379 = vst [vmem:[%s367 + $0x14] sm:%s359] %v378
                  %v380 = vld [vmem:[%s366 + $0x30] sm:%s359]
                  %381 = vst [vmem:[%s367 + $0x18] sm:%s359] %v380
                  %v382 = vld [vmem:[%s366 + $0x38] sm:%s359]
                  %383 = vst [vmem:[%s367 + $0x1c] sm:%s359] %v382
                $region83: #{tpu_custom_call.1} parent=70 // loop_footer
                  %s365 = sadd.s32 1, %s361
                $region84: #{tpu_custom_call.1} parent=70 // loop_footer_branch
                  %360 = sbr.rel target = $region80
                $region85: #{tpu_custom_call.1} parent=70 // loop_exit
                  _
              $region71: #{tpu_custom_call.1} parent=55 // pred_fallthru
                _
            $region56: #{tpu_custom_call.1} parent=51 // pred_fallthru
              _
            // Predicated region
            $region57: #{tpu_custom_call.1} parent=51 // pred_check
              _
            $region58: #{tpu_custom_call.1} parent=51 // pred_check_branch
              %321 = sbr.rel (0) target = $region60
            $region59: #{tpu_custom_call.1} parent=51 // pred_region
              %s323 = ssub.s32 16, 1
              loop: start=0, step=1, limit=1
              $region61: #{tpu_custom_call.1} parent=59 // loop_pre_header
                _
              $region62: #{tpu_custom_call.1} parent=59 // loop_header
                %s325 = sphi 0, %s329
                %p326 = scmp.ge.s32.totalorder %s325, 1
                %s330 = sphi %s315, %s315
                %s331 = sphi %s313, %s313
              $region63: #{tpu_custom_call.1} parent=59 // loop_header_branch
                %328 = sbr.rel (%p326) target = $region67
              $region64: #{tpu_custom_call.1} parent=59 // loop_body
                %v332 = vld [vmem:[%s330] sm:%s323]
                %333 = vst [vmem:[%s331] sm:%s323] %v332
                %v334 = vld [vmem:[%s330 + $0x8] sm:%s323]
                %335 = vst [vmem:[%s331 + $0x4] sm:%s323] %v334
                %v336 = vld [vmem:[%s330 + $0x10] sm:%s323]
                %337 = vst [vmem:[%s331 + $0x8] sm:%s323] %v336
                %v338 = vld [vmem:[%s330 + $0x18] sm:%s323]
                %339 = vst [vmem:[%s331 + $0xc] sm:%s323] %v338
                %v340 = vld [vmem:[%s330 + $0x20] sm:%s323]
                %341 = vst [vmem:[%s331 + $0x10] sm:%s323] %v340
                %v342 = vld [vmem:[%s330 + $0x28] sm:%s323]
                %343 = vst [vmem:[%s331 + $0x14] sm:%s323] %v342
                %v344 = vld [vmem:[%s330 + $0x30] sm:%s323]
                %345 = vst [vmem:[%s331 + $0x18] sm:%s323] %v344
                %v346 = vld [vmem:[%s330 + $0x38] sm:%s323]
                %347 = vst [vmem:[%s331 + $0x1c] sm:%s323] %v346
              $region65: #{tpu_custom_call.1} parent=59 // loop_footer
                %s329 = sadd.s32 1, %s325
              $region66: #{tpu_custom_call.1} parent=59 // loop_footer_branch
                %324 = sbr.rel target = $region62
              $region67: #{tpu_custom_call.1} parent=59 // loop_exit
                _
            $region60: #{tpu_custom_call.1} parent=51 // pred_fallthru
              _
          $region52: #{tpu_custom_call.1} parent=47 // pred_fallthru
            _
          %384 = vnop
        $region48: #{tpu_custom_call.1} parent=39 // pred_fallthru
          _
        // Predicated region
        $region86: #{tpu_custom_call.1} parent=39 // pred_check
          %p385 = pneg %p228
        $region87: #{tpu_custom_call.1} parent=39 // pred_check_branch
          %387 = sbr.rel (%p385) target = $region89
        $region88: #{tpu_custom_call.1} parent=39 // pred_region
          %p388 = scmp.lt.s32.totalorder %s26, 1
          %s389 = scalar_select %p388, %s26, 1
          %s390 = scalar_lea.vmem %s8, %s389
        $region89: #{tpu_custom_call.1} parent=39 // pred_fallthru
          _
      $region40: #{tpu_custom_call.1} parent=5 // pred_fallthru
        _
      %p391 = scmp.le.s32.totalorder 1, %s18
      %p392 = scmp.lt.s32.totalorder %s18, 7
      %p393 = pnand %p391, %p392
      %p394 = pneg %p393
      // Predicated region
      $region90: #{tpu_custom_call.1} parent=5 // pred_check
        _
      $region91: #{tpu_custom_call.1} parent=5 // pred_check_branch
        %396 = sbr.rel (%p393) target = $region93
      $region92: #{tpu_custom_call.1} parent=5 // pred_region
        %s397 = ssub.s32 %s18, 1
        %s398 = sand.u32 %s195, 1
        %s399 = sand.u32 %s195, 1
        %s400 = smul.addr %s399, 32
        %s401 = scalar_lea.vmem [#allocation3], %s400
        // Predicated region
        $region94: #{tpu_custom_call.1} parent=92 // pred_check
          %p402 = pneg %p208
        $region95: #{tpu_custom_call.1} parent=92 // pred_check_branch
          %404 = sbr.rel (%p402) target = $region97
        $region96: #{tpu_custom_call.1} parent=92 // pred_region
          _
        $region97: #{tpu_custom_call.1} parent=92 // pred_fallthru
          _
        %p405 = scmp.lt.s32.totalorder %s27, 2
        %s406 = scalar_select %p405, %s27, 2
        %s407 = smul.addr %s406, 2
        %s408 = smul.addr %s407, 4
        %s409 = scalar_lea.vmem %s0, %s408
        %p410 = pneg %p56
        %p411 = pneg %p53
        %p412 = pneg %p77
        %p413 = pneg %p74
        %p414 = pneg %p98
        %p415 = pneg %p95
        %p416 = pneg %p119
        %p417 = pneg %p116
        %p418 = pneg %p140
        %p419 = pneg %p137
        %p420 = pneg %p161
        %p421 = pneg %p158
        %p422 = pneg %p182
        %p423 = pneg %p179
        %s424 = sand.u32 %s195, 1
        %s425 = sand.u32 %s195, 1
        %s426 = smul.addr %s425, 32
        %s427 = scalar_lea.vmem [#allocation3], %s426
        %p428 = pneg %p208
        %p429 = pneg %p205
        %p430 = scmp.lt.s32.totalorder %s28, 1
        %s431 = scalar_select %p430, %s28, 1
        %s432 = scalar_lea.vmem %s8, %s431
        %p433 = pneg %p234
        %p434 = pneg %p231
        %p435 = pneg %p262
        %p436 = pneg %p259
        %s437 = sand.u32 %s249, 1
        %s438 = scalar_lea.sflag [#allocation5], %s437
        %s439 = sand.u32 %s249, 1
        %s440 = smul.addr %s439, 8
        %s441 = scalar_lea.vmem [#allocation4], %s440
        %p442 = scmp.lt.s32.totalorder %s27, 2
        %s443 = scalar_select %p442, %s27, 2
        %s444 = smul.addr %s443, 2
        %s445 = smul.addr %s444, 4
        %s446 = scalar_lea.vmem %s0, %s445
        %p447 = scmp.lt.s32.totalorder %s28, 1
        %s448 = scalar_select %p447, %s28, 1
        %s449 = scalar_lea.vmem %s8, %s448
        %p451 = scmp.eq.s32.totalorder %s28, 0
        // Predicated region
        $region98: #{tpu_custom_call.1} parent=92 // pred_check
          %p452 = pneg %p451
        $region99: #{tpu_custom_call.1} parent=92 // pred_check_branch
          %454 = sbr.rel (%p452) target = $region101
        $region100: #{tpu_custom_call.1} parent=92 // pred_region
          %v455 = vld [vmem:[%s446] sm:$0xff]
          %v456 = vunpack.c.l.bf16 %v455
          %v457 = vunpack.c.h.bf16 %v455
          %v458 = vmul.f32 %v456, %v456
          %v459 = vmul.f32 %v457, %v457
          %v460 = vadd.f32 %v458, %v459
          %461 = vadd.xlane.f32.xlu0 %v460
          %v462 = vpop.xlane.xlu0 %461
          %v463 = vmax.f32 %v462, 1e-24
          %v464 = vrsqrt.pop %v463
          %v465 = vmul.f32 %v464, %v463
          %v466 = vmul.f32 %v465, %v464
          %v467 = vmul.f32 0.5, %v466
          %v468 = vsub.f32 1.5, %v467
          %v469 = vmul.f32 %v464, %v468
          %vm470 = vweird.f32 %v463
          %vm471 = vweird.f32 %v464
          %vm472 = vmor %vm470, %vm471
          %v473 = vsel %vm472, %v464, %v469
          %v474 = vpack.c.bf16 %v473, %v473
          %v475 = vunpack.c.l.bf16 %v474
          %v476 = vmul.f32 %v456, %v475
          %v477 = vmul.f32 %v457, %v475
          %v478 = vpack.c.bf16 %v476, %v476
          %v479 = vpack.c.bf16 %v477, %v477
          %v480 = vld [vmem:[%s1] sm:$0xf]
          %v481 = vld [vmem:[%s1 + $0x4] sm:$0xf]
          %v482 = vld [vmem:[%s1 + $0x8] sm:$0xf]
          %v483 = vld [vmem:[%s1 + $0xc] sm:$0xf]
          %v484 = vld [vmem:[%s1 + $0x10] sm:$0xf]
          %v485 = vld [vmem:[%s1 + $0x14] sm:$0xf]
          %v486 = vld [vmem:[%s1 + $0x18] sm:$0xf]
          %v487 = vld [vmem:[%s1 + $0x1c] sm:$0xf]
          %v488 = vld [vmem:[%s1 + $0x20] sm:$0xf]
          %v489 = vld [vmem:[%s1 + $0x24] sm:$0xf]
          %v490 = vld [vmem:[%s1 + $0x28] sm:$0xf]
          %v491 = vld [vmem:[%s1 + $0x2c] sm:$0xf]
          %v492 = vld [vmem:[%s1 + $0x30] sm:$0xf]
          %v493 = vld [vmem:[%s1 + $0x34] sm:$0xf]
          %v494 = vld [vmem:[%s1 + $0x38] sm:$0xf]
          %v495 = vld [vmem:[%s1 + $0x3c] sm:$0xf]
          %v496 = vld [vmem:[%s1 + $0x40] sm:$0xf]
          %v497 = vld [vmem:[%s1 + $0x44] sm:$0xf]
          %v498 = vld [vmem:[%s1 + $0x48] sm:$0xf]
          %v499 = vld [vmem:[%s1 + $0x4c] sm:$0xf]
          %v500 = vld [vmem:[%s1 + $0x50] sm:$0xf]
          %v501 = vld [vmem:[%s1 + $0x54] sm:$0xf]
          %v502 = vld [vmem:[%s1 + $0x58] sm:$0xf]
          %v503 = vld [vmem:[%s1 + $0x5c] sm:$0xf]
          %v504 = vld [vmem:[%s1 + $0x60] sm:$0xf]
          %v505 = vld [vmem:[%s1 + $0x64] sm:$0xf]
          %v506 = vld [vmem:[%s1 + $0x68] sm:$0xf]
          %v507 = vld [vmem:[%s1 + $0x6c] sm:$0xf]
          %v508 = vld [vmem:[%s1 + $0x70] sm:$0xf]
          %v509 = vld [vmem:[%s1 + $0x74] sm:$0xf]
          %v510 = vld [vmem:[%s1 + $0x78] sm:$0xf]
          %v511 = vld [vmem:[%s1 + $0x7c] sm:$0xf]
          %v512 = vld [vmem:[%s2] sm:$0x1]
          %v514 = vperm.slane %v512, 0
          %v548 = vunpack.c.l.b16 %v480
          %v549 = vunpack.c.l.b16 %v481
          %v550 = vunpack.c.l.b16 %v482
          %v551 = vunpack.c.l.b16 %v483
          %v552 = vunpack.c.l.b16 %v484
          %v553 = vunpack.c.l.b16 %v485
          %v554 = vunpack.c.l.b16 %v486
          %v555 = vunpack.c.l.b16 %v487
          %v556 = vunpack.c.l.b16 %v488
          %v557 = vunpack.c.l.b16 %v489
          %v558 = vunpack.c.l.b16 %v490
          %v559 = vunpack.c.l.b16 %v491
          %v560 = vunpack.c.l.b16 %v492
          %v561 = vunpack.c.l.b16 %v493
          %v562 = vunpack.c.l.b16 %v494
          %v563 = vunpack.c.l.b16 %v495
          %v564 = vunpack.c.l.b16 %v496
          %v565 = vunpack.c.l.b16 %v497
          %v566 = vunpack.c.l.b16 %v498
          %v567 = vunpack.c.l.b16 %v499
          %v568 = vunpack.c.l.b16 %v500
          %v569 = vunpack.c.l.b16 %v501
          %v570 = vunpack.c.l.b16 %v502
          %v571 = vunpack.c.l.b16 %v503
          %v572 = vunpack.c.l.b16 %v504
          %v573 = vunpack.c.l.b16 %v505
          %v574 = vunpack.c.l.b16 %v506
          %v575 = vunpack.c.l.b16 %v507
          %v576 = vunpack.c.l.b16 %v508
          %v577 = vunpack.c.l.b16 %v509
          %v578 = vunpack.c.l.b16 %v510
          %v579 = vunpack.c.l.b16 %v511
          %v580 = vpack.c.b16 %v549, %v548
          %v581 = vpack.c.b16 %v551, %v550
          %v582 = vpack.c.b16 %v553, %v552
          %v583 = vpack.c.b16 %v555, %v554
          %v584 = vpack.c.b16 %v557, %v556
          %v585 = vpack.c.b16 %v559, %v558
          %v586 = vpack.c.b16 %v561, %v560
          %v587 = vpack.c.b16 %v563, %v562
          %v588 = vpack.c.b16 %v565, %v564
          %v589 = vpack.c.b16 %v567, %v566
          %v590 = vpack.c.b16 %v569, %v568
          %v591 = vpack.c.b16 %v571, %v570
          %v592 = vpack.c.b16 %v573, %v572
          %v593 = vpack.c.b16 %v575, %v574
          %v594 = vpack.c.b16 %v577, %v576
          %v595 = vpack.c.b16 %v579, %v578
          %612 = vmatpush.bf16.msra.mxu0 %v587
          %613 = vmatpush.bf16.msra.mxu0 %v586
          %614 = vmatpush.bf16.msra.mxu0 %v585
          %615 = vmatpush.bf16.msra.mxu0 %v584
          %616 = vmatpush.bf16.msra.mxu0 %v583
          %617 = vmatpush.bf16.msra.mxu0 %v582
          %618 = vmatpush.bf16.msra.mxu0 %v581
          %619 = vmatpush.bf16.msra.mxu0 %v580
          %620 = vmatmul.bf16.gmra.mxu0 %v478
          %v621 = vpop.f32.mrf.mxu0
          %v622 = vadd.f32 %v514, %v621
          %v623 = vpop.f32.mrf.mxu0
          %624 = vdwg.mxu0
          %625 = vmatpush.bf16.msra.mxu0 %v595
          %626 = vmatpush.bf16.msra.mxu0 %v594
          %627 = vmatpush.bf16.msra.mxu0 %v593
          %628 = vmatpush.bf16.msra.mxu0 %v592
          %629 = vmatpush.bf16.msra.mxu0 %v591
          %630 = vmatpush.bf16.msra.mxu0 %v590
          %631 = vmatpush.bf16.msra.mxu0 %v589
          %632 = vmatpush.bf16.msra.mxu0 %v588
          %633 = vmatmul.bf16.gmra.mxu0 %v479
          %v634 = vpop.f32.mrf.mxu0
          %v635 = vadd.f32 %v622, %v634
          %v636 = vpop.f32.mrf.mxu0
          %637 = vdwg.mxu0
          %v638 = vtanh.pop %v635
          %v639 = vpack.c.bf16 %v638, %v638
          %v640 = vld [vmem:[%s3] sm:$0xf]
          %v641 = vld [vmem:[%s3 + $0x4] sm:$0xf]
          %v642 = vld [vmem:[%s3 + $0x8] sm:$0xf]
          %v643 = vld [vmem:[%s3 + $0xc] sm:$0xf]
          %v644 = vld [vmem:[%s3 + $0x10] sm:$0xf]
          %v645 = vld [vmem:[%s3 + $0x14] sm:$0xf]
          %v646 = vld [vmem:[%s3 + $0x18] sm:$0xf]
          %v647 = vld [vmem:[%s3 + $0x1c] sm:$0xf]
          %v648 = vld [vmem:[%s4] sm:$0x1]
          %v650 = vperm.slane %v648, 0
          %v660 = vunpack.c.l.b16 %v640
          %v661 = vunpack.c.l.b16 %v641
          %v662 = vunpack.c.l.b16 %v642
          %v663 = vunpack.c.l.b16 %v643
          %v664 = vunpack.c.l.b16 %v644
          %v665 = vunpack.c.l.b16 %v645
          %v666 = vunpack.c.l.b16 %v646
          %v667 = vunpack.c.l.b16 %v647
          %v668 = vpack.c.b16 %v661, %v660
          %v669 = vpack.c.b16 %v663, %v662
          %v670 = vpack.c.b16 %v665, %v664
          %v671 = vpack.c.b16 %v667, %v666
          %vm676 = vcmask 523264
          %v678 = vsel %vm676, %v639, 0
          %680 = vmatpush.bf16.msra.mxu0 0
          %681 = vmatpush.bf16.msra.mxu0 0
          %682 = vmatpush.bf16.msra.mxu0 0
          %683 = vmatpush.bf16.msra.mxu0 0
          %684 = vmatpush.bf16.msra.mxu0 %v671
          %685 = vmatpush.bf16.msra.mxu0 %v670
          %686 = vmatpush.bf16.msra.mxu0 %v669
          %687 = vmatpush.bf16.msra.mxu0 %v668
          %688 = vmatmul.bf16.gmra.mxu0 %v678
          %v689 = vpop.f32.mrf.mxu0
          %v690 = vadd.f32 %v650, %v689
          %v691 = vpop.f32.mrf.mxu0
          %692 = vdwg.mxu0
          %v693 = vtanh.pop %v690
          %v694 = vpack.c.bf16 %v693, %v693
          %v695 = vld [vmem:[%s5] sm:$0xf]
          %v696 = vld [vmem:[%s5 + $0x4] sm:$0xf]
          %v697 = vld [vmem:[%s5 + $0x8] sm:$0xf]
          %v698 = vld [vmem:[%s5 + $0xc] sm:$0xf]
          %v699 = vld [vmem:[%s6] sm:$0x1]
          %v701 = vperm.slane %v699, 0
          %v707 = vunpack.c.l.b16 %v695
          %v708 = vunpack.c.l.b16 %v696
          %v709 = vunpack.c.l.b16 %v697
          %v710 = vunpack.c.l.b16 %v698
          %v711 = vpack.c.b16 %v708, %v707
          %v712 = vpack.c.b16 %v710, %v709
          %vm715 = vcmask 261120
          %v717 = vsel %vm715, %v694, 0
          %719 = vmatpush.bf16.msra.mxu0 0
          %720 = vmatpush.bf16.msra.mxu0 0
          %721 = vmatpush.bf16.msra.mxu0 0
          %722 = vmatpush.bf16.msra.mxu0 0
          %723 = vmatpush.bf16.msra.mxu0 0
          %724 = vmatpush.bf16.msra.mxu0 0
          %725 = vmatpush.bf16.msra.mxu0 %v712
          %726 = vmatpush.bf16.msra.mxu0 %v711
          %727 = vmatmul.bf16.gmra.mxu0 %v717
          %v728 = vpop.f32.mrf.mxu0
          %v729 = vadd.f32 %v701, %v728
          %v730 = vpop.f32.mrf.mxu0
          %731 = vdwg.mxu0
          %v732 = vtanh.pop %v729
          %v733 = vpack.c.bf16 %v732, %v732
          %vm734 = vcmask 519168
          %735 = vst.msk [vmem:[#allocation2] sm:$0xf] %vm734, %v733
        $region101: #{tpu_custom_call.1} parent=92 // pred_fallthru
          _
        %v736 = vld [vmem:[%s401] sm:$0xf]
        %v737 = vld [vmem:[%s401 + $0x4] sm:$0xf]
        %v738 = vld [vmem:[%s401 + $0x8] sm:$0xf]
        %v739 = vld [vmem:[%s401 + $0xc] sm:$0xf]
        %v740 = vld [vmem:[%s401 + $0x10] sm:$0xf]
        %v741 = vld [vmem:[%s401 + $0x14] sm:$0xf]
        %v742 = vld [vmem:[%s401 + $0x18] sm:$0xf]
        %v743 = vld [vmem:[%s401 + $0x1c] sm:$0xf]
        %v744 = vld [vmem:[%s449] sm:$0x1]
        %v745 = vld [vmem:[#allocation2] sm:$0xf]
        %v747 = vperm.slane %v744, 0
        %v757 = vunpack.c.l.b16 %v736
        %v758 = vunpack.c.l.b16 %v737
        %v759 = vunpack.c.l.b16 %v738
        %v760 = vunpack.c.l.b16 %v739
        %v761 = vunpack.c.l.b16 %v740
        %v762 = vunpack.c.l.b16 %v741
        %v763 = vunpack.c.l.b16 %v742
        %v764 = vunpack.c.l.b16 %v743
        %v765 = vpack.c.b16 %v758, %v757
        %v766 = vpack.c.b16 %v760, %v759
        %v767 = vpack.c.b16 %v762, %v761
        %v768 = vpack.c.b16 %v764, %v763
        %vm773 = vcmask 523264
        %v775 = vsel %vm773, %v745, 0
        %777 = vmatpush.bf16.msra.mxu0 0
        %778 = vmatpush.bf16.msra.mxu0 0
        %779 = vmatpush.bf16.msra.mxu0 0
        %780 = vmatpush.bf16.msra.mxu0 0
        %781 = vmatpush.bf16.msra.mxu0 %v768
        %782 = vmatpush.bf16.msra.mxu0 %v767
        %783 = vmatpush.bf16.msra.mxu0 %v766
        %784 = vmatpush.bf16.msra.mxu0 %v765
        %785 = vmatmul.bf16.gmra.mxu0 %v775
        %v786 = vpop.f32.mrf.mxu0
        %v787 = vadd.f32 %v747, %v786
        %v788 = vpop.f32.mrf.mxu0
        %789 = vdwg.mxu0
        %790 = vst [vmem:[%s441] sm:$0xff] %v787
        %s791 = sand.u32 %s249, 1
        %s792 = scalar_lea.sflag [#allocation5], %s791
        %s793 = sand.u32 %s249, 1
        %s794 = smul.addr %s793, 8
        %s795 = scalar_lea.vmem [#allocation4], %s794
        // Predicated region
        $region102: #{tpu_custom_call.1} parent=92 // pred_check
          %p796 = pneg %p259
        $region103: #{tpu_custom_call.1} parent=92 // pred_check_branch
          %798 = sbr.rel (%p796) target = $region105
        $region104: #{tpu_custom_call.1} parent=92 // pred_region
          %800 = vsyncadd %s792, 0
          %s801 = smul.addr %s27, 2
          %s802 = sadd.s32 %s28, %s801
          %s803 = smul.addr %s802, 8
          %s804 = scalar_lea.hbm %s9, %s803
          %s806 = sshll.u32 %s795, 4
          %s807 = int_to_ptr.vmem [resolvable:$true] %s806
          %s808 = sshll.u32 %s804, 4
          %s809 = int_to_ptr.hbm [resolvable:$true] %s808
          %811 = dma.vmem_to_hbm [thread:$0]  %s807, 128, %s809, %s792
        $region105: #{tpu_custom_call.1} parent=92 // pred_fallthru
          _
      $region93: #{tpu_custom_call.1} parent=5 // pred_fallthru
        _
      %p812 = scmp.le.s32.totalorder 2, %s18
      // Predicated region
      $region106: #{tpu_custom_call.1} parent=5 // pred_check
        %p813 = pneg %p812
      $region107: #{tpu_custom_call.1} parent=5 // pred_check_branch
        %815 = sbr.rel (%p813) target = $region109
      $region108: #{tpu_custom_call.1} parent=5 // pred_region
        %s816 = ssub.s32 %s18, 2
        // Predicated region
        $region110: #{tpu_custom_call.1} parent=108 // pred_check
          %p817 = pneg %p265
        $region111: #{tpu_custom_call.1} parent=108 // pred_check_branch
          %819 = sbr.rel (%p817) target = $region113
        $region112: #{tpu_custom_call.1} parent=108 // pred_region
          %s820 = sand.u32 %s250, 1
          %s821 = scalar_lea.sflag [#allocation5], %s820
          %s822 = sand.u32 %s250, 1
          %s823 = smul.addr %s822, 8
          %s824 = scalar_lea.vmem [#allocation4], %s823
          %826 = dma.done %s821, 128
        $region113: #{tpu_custom_call.1} parent=108 // pred_fallthru
          _
      $region109: #{tpu_custom_call.1} parent=5 // pred_fallthru
        _
    $region6: #{tpu_custom_call.1} parent=1 // loop_footer
      %s22 = sadd.s32 1, %s18
    $region7: #{tpu_custom_call.1} parent=1 // loop_footer_branch
      %17 = sbr.rel target = $region3
    $region8: #{tpu_custom_call.1} parent=1 // loop_exit
      _
    %827 = vsyncpa [#allocation5], 1
    %s828 = scalar_lea.sflag [#allocation5], 1
    %829 = vsyncpa %s828, 1

// kernel: tpu_custom_call.1
$region0: #{tpu_custom_call.1}
  #allocation0 [shape = 'u32[]', space=smem, size = 0x4, offset = 0x4, fixed_abs, tag = 'smem constant byte address 0x4 - core index']
  #allocation1 [shape = 'u32[72,128]{1,0:T(1,128)}', space=vmem, size = 0x9000, scoped, tag = 'internal scratch']
  #allocation2 [shape = 'bf16[8,64]{1,0:T(8,128)(2,1)}', space=vmem, size = 0x800, scoped, tag = 'scratch operand']
  %s0 = inlined_call_operand.vmem [shape: bf16[24,256], index: 0, kind: input, shape index: {}]
  %s1 = inlined_call_operand.vmem [shape: bf16[256,64], index: 1, kind: input, shape index: {}]
  %s2 = inlined_call_operand.vmem [shape: f32[1,64], index: 2, kind: input, shape index: {}]
  %s3 = inlined_call_operand.vmem [shape: bf16[64,32], index: 3, kind: input, shape index: {}]
  %s4 = inlined_call_operand.vmem [shape: f32[1,32], index: 4, kind: input, shape index: {}]
  %s5 = inlined_call_operand.vmem [shape: bf16[32,64], index: 5, kind: input, shape index: {}]
  %s6 = inlined_call_operand.vmem [shape: f32[1,64], index: 6, kind: input, shape index: {}]
  %s7 = inlined_call_operand.vmem [shape: bf16[64,256], index: 7, kind: input, shape index: {}]
  %s8 = inlined_call_operand.vmem [shape: f32[1,256], index: 8, kind: input, shape index: {}]
  %s9 = inlined_call_operand.hbm [shape: f32[24,256], index: 9, kind: output, shape index: {}]
  %s10 = sld [smem:[#allocation0]]
  $region114: #{tpu_custom_call.1} parent=0
    _
  %s12 = ssub.s32 1, %s10
  %s13 = scalar_select 0, %s12, %s10
  $region1: #{tpu_custom_call.1} parent=0
    #allocation3 [shape = 'u8[32768]{0}', space=vmem, size = 0x8000, scoped, tag = 'input window, operand 7']
    #allocation4 [shape = 'u8[8192]{0}', space=vmem, size = 0x2000, scoped, tag = 'output window, operand 0']
    #allocation5 [shape = 's32[2]{0}', space=sflag, size = 0x8, scoped, tag = 'scoped memory for tpu_custom_call.1']
    %14 = vsyncpa [#allocation5], 0
    %s15 = scalar_lea.sflag [#allocation5], 1
    %16 = vsyncpa %s15, 0
    loop: start=0, step=1, limit=8
    $region2: #{tpu_custom_call.1} parent=1 // loop_pre_header
      _
    $region3: #{tpu_custom_call.1} parent=1 // loop_header
      %s18 = sphi 0, %s22
      %p19 = scmp.ge.s32.totalorder %s18, 8
      %s25 = sphi 0, %s37
      %s26 = sphi 0, %s33
      %s27 = sphi 0, %s25
      %s28 = sphi 0, %s26
      %s29 = sphi 0, %s27
      %s30 = sphi 0, %s28
      %s40 = sphi 0, %s42
      %s43 = sphi 0, %s40
      %s44 = sphi 0, %s43
      %s60 = sphi 0, %s44
      %s64 = sphi 0, %s64
      %s66 = sphi 0, %s64
      %s67 = sphi 0, %s66
      %s81 = sphi 0, %s67
      %s85 = sphi 0, %s85
      %s87 = sphi 0, %s85
      %s88 = sphi 0, %s87
      %s102 = sphi 0, %s88
      %s106 = sphi 0, %s106
      %s108 = sphi 0, %s106
      %s109 = sphi 0, %s108
      %s123 = sphi 0, %s109
      %s127 = sphi 0, %s127
      %s129 = sphi 0, %s127
      %s130 = sphi 0, %s129
      %s144 = sphi 0, %s130
      %s148 = sphi 0, %s148
      %s150 = sphi 0, %s148
      %s151 = sphi 0, %s150
      %s165 = sphi 0, %s151
      %s169 = sphi 0, %s169
      %s171 = sphi 0, %s169
      %s172 = sphi 0, %s171
      %s186 = sphi 0, %s172
      %s192 = sphi 0, %s194
      %s195 = sphi 0, %s192
      %s196 = sphi 0, %s195
      %s212 = sphi 0, %s196
      %s218 = sphi 0, %s220
      %s221 = sphi 0, %s218
      %s222 = sphi 0, %s221
      %s238 = sphi 0, %s222
      %s246 = sphi 0, %s248
      %s249 = sphi 0, %s246
      %s250 = sphi 0, %s249
      %s266 = sphi 0, %s250
    $region4: #{tpu_custom_call.1} parent=1 // loop_header_branch
      %21 = sbr.rel (%p19) target = $region8
    $region5: #{tpu_custom_call.1} parent=1 // loop_body
      %s23 = ssub.s32 %s18, 1
      %s24 = ssub.s32 %s18, 2
      %s31 = sadd.s32 1, %s26
      %p32 = scmp.ge.s32.totalorder %s31, 2
      %s33 = scalar_select %p32, 0, %s31
      %s34 = sadd.s32 1, %s25
      %s35 = scalar_select %p32, %s34, %s25
      %p36 = scmp.ge.s32.totalorder %s35, 3
      %s37 = scalar_select %p36, 0, %s35
      %s38 = ssub.s32 %s25, %s37
      %p39 = scmp.eq.s32.totalorder %s38, 0
      %s41 = sadd.s32 %s40, 1
      %s42 = scalar_select %p39, %s40, %s41
      %p45 = pneg %p39
      %p46 = scmp.eq.s32.totalorder %s18, 5
      %p47 = por %p45, %p46
      %p48 = scmp.ne.s32.totalorder %s40, %s43
      %p49 = scmp.eq.s32.totalorder %s18, 0
      %p50 = por %p48, %p49
      %p51 = scmp.ne.s32.totalorder %s40, %s43
      %p52 = scmp.eq.s32.totalorder %s23, 5
      %p53 = por %p51, %p52
      %p54 = scmp.ne.s32.totalorder %s43, %s44
      %p55 = scmp.eq.s32.totalorder %s23, 0
      %p56 = por %p54, %p55
      %p57 = scmp.ne.s32.totalorder %s43, %s44
      %p58 = scmp.eq.s32.totalorder %s24, 5
      %p59 = por %p57, %p58
      %p61 = scmp.ne.s32.totalorder %s44, %s60
      %p62 = scmp.eq.s32.totalorder %s24, 0
      %p63 = por %p61, %p62
      %s65 = sadd.s32 %s64, 1
      %p68 = scmp.eq.s32.totalorder %s18, 5
      %p69 = scmp.ne.s32.totalorder %s64, %s66
      %p70 = scmp.eq.s32.totalorder %s18, 0
      %p71 = por %p69, %p70
      %p72 = scmp.ne.s32.totalorder %s64, %s66
      %p73 = scmp.eq.s32.totalorder %s23, 5
      %p74 = por %p72, %p73
      %p75 = scmp.ne.s32.totalorder %s66, %s67
      %p76 = scmp.eq.s32.totalorder %s23, 0
      %p77 = por %p75, %p76
      %p78 = scmp.ne.s32.totalorder %s66, %s67
      %p79 = scmp.eq.s32.totalorder %s24, 5
      %p80 = por %p78, %p79
      %p82 = scmp.ne.s32.totalorder %s67, %s81
      %p83 = scmp.eq.s32.totalorder %s24, 0
      %p84 = por %p82, %p83
      %s86 = sadd.s32 %s85, 1
      %p89 = scmp.eq.s32.totalorder %s18, 5
      %p90 = scmp.ne.s32.totalorder %s85, %s87
      %p91 = scmp.eq.s32.totalorder %s18, 0
      %p92 = por %p90, %p91
      %p93 = scmp.ne.s32.totalorder %s85, %s87
      %p94 = scmp.eq.s32.totalorder %s23, 5
      %p95 = por %p93, %p94
      %p96 = scmp.ne.s32.totalorder %s87, %s88
      %p97 = scmp.eq.s32.totalorder %s23, 0
      %p98 = por %p96, %p97
      %p99 = scmp.ne.s32.totalorder %s87, %s88
      %p100 = scmp.eq.s32.totalorder %s24, 5
      %p101 = por %p99, %p100
      %p103 = scmp.ne.s32.totalorder %s88, %s102
      %p104 = scmp.eq.s32.totalorder %s24, 0
      %p105 = por %p103, %p104
      %s107 = sadd.s32 %s106, 1
      %p110 = scmp.eq.s32.totalorder %s18, 5
      %p111 = scmp.ne.s32.totalorder %s106, %s108
      %p112 = scmp.eq.s32.totalorder %s18, 0
      %p113 = por %p111, %p112
      %p114 = scmp.ne.s32.totalorder %s106, %s108
      %p115 = scmp.eq.s32.totalorder %s23, 5
      %p116 = por %p114, %p115
      %p117 = scmp.ne.s32.totalorder %s108, %s109
      %p118 = scmp.eq.s32.totalorder %s23, 0
      %p119 = por %p117, %p118
      %p120 = scmp.ne.s32.totalorder %s108, %s109
      %p121 = scmp.eq.s32.totalorder %s24, 5
      %p122 = por %p120, %p121
      %p124 = scmp.ne.s32.totalorder %s109, %s123
      %p125 = scmp.eq.s32.totalorder %s24, 0
      %p126 = por %p124, %p125
      %s128 = sadd.s32 %s127, 1
      %p131 = scmp.eq.s32.totalorder %s18, 5
      %p132 = scmp.ne.s32.totalorder %s127, %s129
      %p133 = scmp.eq.s32.totalorder %s18, 0
      %p134 = por %p132, %p133
      %p135 = scmp.ne.s32.totalorder %s127, %s129
      %p136 = scmp.eq.s32.totalorder %s23, 5
      %p137 = por %p135, %p136
      %p138 = scmp.ne.s32.totalorder %s129, %s130
      %p139 = scmp.eq.s32.totalorder %s23, 0
      %p140 = por %p138, %p139
      %p141 = scmp.ne.s32.totalorder %s129, %s130
      %p142 = scmp.eq.s32.totalorder %s24, 5
      %p143 = por %p141, %p142
      %p145 = scmp.ne.s32.totalorder %s130, %s144
      %p146 = scmp.eq.s32.totalorder %s24, 0
      %p147 = por %p145, %p146
      %s149 = sadd.s32 %s148, 1
      %p152 = scmp.eq.s32.totalorder %s18, 5
      %p153 = scmp.ne.s32.totalorder %s148, %s150
      %p154 = scmp.eq.s32.totalorder %s18, 0
      %p155 = por %p153, %p154
      %p156 = scmp.ne.s32.totalorder %s148, %s150
      %p157 = scmp.eq.s32.totalorder %s23, 5
      %p158 = por %p156, %p157
      %p159 = scmp.ne.s32.totalorder %s150, %s151
      %p160 = scmp.eq.s32.totalorder %s23, 0
      %p161 = por %p159, %p160
      %p162 = scmp.ne.s32.totalorder %s150, %s151
      %p163 = scmp.eq.s32.totalorder %s24, 5
      %p164 = por %p162, %p163
      %p166 = scmp.ne.s32.totalorder %s151, %s165
      %p167 = scmp.eq.s32.totalorder %s24, 0
      %p168 = por %p166, %p167
      %s170 = sadd.s32 %s169, 1
      %p173 = scmp.eq.s32.totalorder %s18, 5
      %p174 = scmp.ne.s32.totalorder %s169, %s171
      %p175 = scmp.eq.s32.totalorder %s18, 0
      %p176 = por %p174, %p175
      %p177 = scmp.ne.s32.totalorder %s169, %s171
      %p178 = scmp.eq.s32.totalorder %s23, 5
      %p179 = por %p177, %p178
      %p180 = scmp.ne.s32.totalorder %s171, %s172
      %p181 = scmp.eq.s32.totalorder %s23, 0
      %p182 = por %p180, %p181
      %p183 = scmp.ne.s32.totalorder %s171, %s172
      %p184 = scmp.eq.s32.totalorder %s24, 5
      %p185 = por %p183, %p184
      %p187 = scmp.ne.s32.totalorder %s172, %s186
      %p188 = scmp.eq.s32.totalorder %s24, 0
      %p189 = por %p187, %p188
      %s190 = ssub.s32 %s26, %s33
      %p191 = scmp.eq.s32.totalorder %s190, 0
      %s193 = sadd.s32 %s192, 1
      %s194 = scalar_select %p191, %s192, %s193
      %p197 = pneg %p191
      %p198 = scmp.eq.s32.totalorder %s18, 5
      %p199 = por %p197, %p198
      %p200 = scmp.ne.s32.totalorder %s192, %s195
      %p201 = scmp.eq.s32.totalorder %s18, 0
      %p202 = por %p200, %p201
      %p203 = scmp.ne.s32.totalorder %s192, %s195
      %p204 = scmp.eq.s32.totalorder %s23, 5
      %p205 = por %p203, %p204
      %p206 = scmp.ne.s32.totalorder %s195, %s196
      %p207 = scmp.eq.s32.totalorder %s23, 0
      %p208 = por %p206, %p207
      %p209 = scmp.ne.s32.totalorder %s195, %s196
      %p210 = scmp.eq.s32.totalorder %s24, 5
      %p211 = por %p209, %p210
      %p213 = scmp.ne.s32.totalorder %s196, %s212
      %p214 = scmp.eq.s32.totalorder %s24, 0
      %p215 = por %p213, %p214
      %s216 = ssub.s32 %s26, %s33
      %p217 = scmp.eq.s32.totalorder %s216, 0
      %s219 = sadd.s32 %s218, 1
      %s220 = scalar_select %p217, %s218, %s219
      %p223 = pneg %p217
      %p224 = scmp.eq.s32.totalorder %s18, 5
      %p225 = por %p223, %p224
      %p226 = scmp.ne.s32.totalorder %s218, %s221
      %p227 = scmp.eq.s32.totalorder %s18, 0
      %p228 = por %p226, %p227
      %p229 = scmp.ne.s32.totalorder %s218, %s221
      %p230 = scmp.eq.s32.totalorder %s23, 5
      %p231 = por %p229, %p230
      %p232 = scmp.ne.s32.totalorder %s221, %s222
      %p233 = scmp.eq.s32.totalorder %s23, 0
      %p234 = por %p232, %p233
      %p235 = scmp.ne.s32.totalorder %s221, %s222
      %p236 = scmp.eq.s32.totalorder %s24, 5
      %p237 = por %p235, %p236
      %p239 = scmp.ne.s32.totalorder %s222, %s238
      %p240 = scmp.eq.s32.totalorder %s24, 0
      %p241 = por %p239, %p240
      %s242 = ssub.s32 %s25, %s37
      %s243 = ssub.s32 %s26, %s33
      %s244 = sor.u32 %s242, %s243
      %p245 = scmp.eq.s32.totalorder %s244, 0
      %s247 = sadd.s32 %s246, 1
      %s248 = scalar_select %p245, %s246, %s247
      %p251 = pneg %p245
      %p252 = scmp.eq.s32.totalorder %s18, 5
      %p253 = por %p251, %p252
      %p254 = scmp.ne.s32.totalorder %s246, %s249
      %p255 = scmp.eq.s32.totalorder %s18, 0
      %p256 = por %p254, %p255
      %p257 = scmp.ne.s32.totalorder %s246, %s249
      %p258 = scmp.eq.s32.totalorder %s23, 5
      %p259 = por %p257, %p258
      %p260 = scmp.ne.s32.totalorder %s249, %s250
      %p261 = scmp.eq.s32.totalorder %s23, 0
      %p262 = por %p260, %p261
      %p263 = scmp.ne.s32.totalorder %s249, %s250
      %p264 = scmp.eq.s32.totalorder %s24, 5
      %p265 = por %p263, %p264
      %p267 = scmp.ne.s32.totalorder %s250, %s266
      %p268 = scmp.eq.s32.totalorder %s24, 0
      %p269 = por %p267, %p268
      %p270 = scmp.le.s32.totalorder 1, %s18
      %p271 = scmp.lt.s32.totalorder %s18, 7
      %p272 = pnand %p270, %p271
      %p273 = pneg %p272
      // Predicated region
      $region9: #{tpu_custom_call.1} parent=5 // pred_check
        _
      $region10: #{tpu_custom_call.1} parent=5 // pred_check_branch
        %275 = sbr.rel (%p272) target = $region12
      $region11: #{tpu_custom_call.1} parent=5 // pred_region
        %s276 = ssub.s32 %s18, 1
        // Predicated region
        $region13: #{tpu_custom_call.1} parent=11 // pred_check
          %p277 = pneg %p77
        $region14: #{tpu_custom_call.1} parent=11 // pred_check_branch
          %279 = sbr.rel (%p277) target = $region16
        $region15: #{tpu_custom_call.1} parent=11 // pred_region
          _
        $region16: #{tpu_custom_call.1} parent=11 // pred_fallthru
          _
        // Predicated region
        $region17: #{tpu_custom_call.1} parent=11 // pred_check
          %p280 = pneg %p98
        $region18: #{tpu_custom_call.1} parent=11 // pred_check_branch
          %282 = sbr.rel (%p280) target = $region20
        $region19: #{tpu_custom_call.1} parent=11 // pred_region
          _
        $region20: #{tpu_custom_call.1} parent=11 // pred_fallthru
          _
        // Predicated region
        $region21: #{tpu_custom_call.1} parent=11 // pred_check
          %p283 = pneg %p119
        $region22: #{tpu_custom_call.1} parent=11 // pred_check_branch
          %285 = sbr.rel (%p283) target = $region24
        $region23: #{tpu_custom_call.1} parent=11 // pred_region
          _
        $region24: #{tpu_custom_call.1} parent=11 // pred_fallthru
          _
        // Predicated region
        $region25: #{tpu_custom_call.1} parent=11 // pred_check
          %p286 = pneg %p140
        $region26: #{tpu_custom_call.1} parent=11 // pred_check_branch
          %288 = sbr.rel (%p286) target = $region28
        $region27: #{tpu_custom_call.1} parent=11 // pred_region
          _
        $region28: #{tpu_custom_call.1} parent=11 // pred_fallthru
          _
        // Predicated region
        $region29: #{tpu_custom_call.1} parent=11 // pred_check
          %p289 = pneg %p161
        $region30: #{tpu_custom_call.1} parent=11 // pred_check_branch
          %291 = sbr.rel (%p289) target = $region32
        $region31: #{tpu_custom_call.1} parent=11 // pred_region
          _
        $region32: #{tpu_custom_call.1} parent=11 // pred_fallthru
          _
        // Predicated region
        $region33: #{tpu_custom_call.1} parent=11 // pred_check
          %p292 = pneg %p182
        $region34: #{tpu_custom_call.1} parent=11 // pred_check_branch
          %294 = sbr.rel (%p292) target = $region36
        $region35: #{tpu_custom_call.1} parent=11 // pred_region
          _
        $region36: #{tpu_custom_call.1} parent=11 // pred_fallthru
          _
      $region12: #{tpu_custom_call.1} parent=5 // pred_fallthru
        _
      %p295 = scmp.lt.s32.totalorder %s18, 6
      // Predicated region
      $region37: #{tpu_custom_call.1} parent=5 // pred_check
        %p296 = pneg %p295
      $region38: #{tpu_custom_call.1} parent=5 // pred_check_branch
        %298 = sbr.rel (%p296) target = $region40
      $region39: #{tpu_custom_call.1} parent=5 // pred_region
        // Predicated region
        $region41: #{tpu_custom_call.1} parent=39 // pred_check
          %p299 = pneg %p50
        $region42: #{tpu_custom_call.1} parent=39 // pred_check_branch
          %301 = sbr.rel (%p299) target = $region44
        $region43: #{tpu_custom_call.1} parent=39 // pred_region
          %p302 = scmp.lt.s32.totalorder %s25, 2
          %s303 = scalar_select %p302, %s25, 2
          %s304 = smul.addr %s303, 2
          %s305 = smul.addr %s304, 4
          %s306 = scalar_lea.vmem %s0, %s305
        $region44: #{tpu_custom_call.1} parent=39 // pred_fallthru
          _
        // Predicated region
        $region45: #{tpu_custom_call.1} parent=39 // pred_check
          %p307 = pneg %p202
        $region46: #{tpu_custom_call.1} parent=39 // pred_check_branch
          %309 = sbr.rel (%p307) target = $region48
        $region47: #{tpu_custom_call.1} parent=39 // pred_region
          %s310 = sand.u32 %s192, 1
          %s311 = sand.u32 %s192, 1
          %s312 = smul.addr %s311, 32
          %s313 = scalar_lea.vmem [#allocation3], %s312
          %s314 = smul.addr %s26, 4
          %s315 = scalar_lea.vmem %s7, %s314
          // Predicated region
          $region49: #{tpu_custom_call.1} parent=47 // pred_check
            _
          $region50: #{tpu_custom_call.1} parent=47 // pred_check_branch
            %317 = sbr.rel (0) target = $region52
          $region51: #{tpu_custom_call.1} parent=47 // pred_region
            // Predicated region
            $region53: #{tpu_custom_call.1} parent=51 // pred_check
              _
            $region54: #{tpu_custom_call.1} parent=51 // pred_check_branch
              %319 = sbr.rel target = $region56
            $region55: #{tpu_custom_call.1} parent=51 // pred_region
              // Predicated region
              $region68: #{tpu_custom_call.1} parent=55 // pred_check
                _
              $region69: #{tpu_custom_call.1} parent=55 // pred_check_branch
                %349 = sbr.rel (0) target = $region71
              $region70: #{tpu_custom_call.1} parent=55 // pred_region
                loop: start=0, step=1, limit=1
                $region72: #{tpu_custom_call.1} parent=70 // loop_pre_header
                  _
                $region73: #{tpu_custom_call.1} parent=70 // loop_header
                  %s351 = sphi 0, %s355
                  %p352 = scmp.ge.s32.totalorder %s351, 1
                  %s356 = sphi %s315, %s315
                  %s357 = sphi %s313, %s313
                $region74: #{tpu_custom_call.1} parent=70 // loop_header_branch
                  %354 = sbr.rel (%p352) target = $region78
                $region75: #{tpu_custom_call.1} parent=70 // loop_body
                  _
                $region76: #{tpu_custom_call.1} parent=70 // loop_footer
                  %s355 = sadd.s32 1, %s351
                $region77: #{tpu_custom_call.1} parent=70 // loop_footer_branch
                  %350 = sbr.rel target = $region73
                $region78: #{tpu_custom_call.1} parent=70 // loop_exit
                  _
                %s359 = ssub.s32 16, 1
                loop: start=0, step=1, limit=1
                $region79: #{tpu_custom_call.1} parent=70 // loop_pre_header
                  _
                $region80: #{tpu_custom_call.1} parent=70 // loop_header
                  %s361 = sphi 0, %s365
                  %p362 = scmp.ge.s32.totalorder %s361, 1
                  %s366 = sphi %s315, %s315
                  %s367 = sphi %s313, %s313
                $region81: #{tpu_custom_call.1} parent=70 // loop_header_branch
                  %364 = sbr.rel (%p362) target = $region85
                $region82: #{tpu_custom_call.1} parent=70 // loop_body
                  %v368 = vld [vmem:[%s366] sm:%s359]
                  %369 = vst [vmem:[%s367] sm:%s359] %v368
                  %v370 = vld [vmem:[%s366 + $0x8] sm:%s359]
                  %371 = vst [vmem:[%s367 + $0x4] sm:%s359] %v370
                  %v372 = vld [vmem:[%s366 + $0x10] sm:%s359]
                  %373 = vst [vmem:[%s367 + $0x8] sm:%s359] %v372
                  %v374 = vld [vmem:[%s366 + $0x18] sm:%s359]
                  %375 = vst [vmem:[%s367 + $0xc] sm:%s359] %v374
                  %v376 = vld [vmem:[%s366 + $0x20] sm:%s359]
                  %377 = vst [vmem:[%s367 + $0x10] sm:%s359] %v376
                  %v378 = vld [vmem:[%s366 + $0x28] sm:%s359]
                  %379 = vst [vmem:[%s367 + $0x14] sm:%s359] %v378
                  %v380 = vld [vmem:[%s366 + $0x30] sm:%s359]
                  %381 = vst [vmem:[%s367 + $0x18] sm:%s359] %v380
                  %v382 = vld [vmem:[%s366 + $0x38] sm:%s359]
                  %383 = vst [vmem:[%s367 + $0x1c] sm:%s359] %v382
                $region83: #{tpu_custom_call.1} parent=70 // loop_footer
                  %s365 = sadd.s32 1, %s361
                $region84: #{tpu_custom_call.1} parent=70 // loop_footer_branch
                  %360 = sbr.rel target = $region80
                $region85: #{tpu_custom_call.1} parent=70 // loop_exit
                  _
              $region71: #{tpu_custom_call.1} parent=55 // pred_fallthru
                _
            $region56: #{tpu_custom_call.1} parent=51 // pred_fallthru
              _
            // Predicated region
            $region57: #{tpu_custom_call.1} parent=51 // pred_check
              _
            $region58: #{tpu_custom_call.1} parent=51 // pred_check_branch
              %321 = sbr.rel (0) target = $region60
            $region59: #{tpu_custom_call.1} parent=51 // pred_region
              %s323 = ssub.s32 16, 1
              loop: start=0, step=1, limit=1
              $region61: #{tpu_custom_call.1} parent=59 // loop_pre_header
                _
              $region62: #{tpu_custom_call.1} parent=59 // loop_header
                %s325 = sphi 0, %s329
                %p326 = scmp.ge.s32.totalorder %s325, 1
                %s330 = sphi %s315, %s315
                %s331 = sphi %s313, %s313
              $region63: #{tpu_custom_call.1} parent=59 // loop_header_branch
                %328 = sbr.rel (%p326) target = $region67
              $region64: #{tpu_custom_call.1} parent=59 // loop_body
                %v332 = vld [vmem:[%s330] sm:%s323]
                %333 = vst [vmem:[%s331] sm:%s323] %v332
                %v334 = vld [vmem:[%s330 + $0x8] sm:%s323]
                %335 = vst [vmem:[%s331 + $0x4] sm:%s323] %v334
                %v336 = vld [vmem:[%s330 + $0x10] sm:%s323]
                %337 = vst [vmem:[%s331 + $0x8] sm:%s323] %v336
                %v338 = vld [vmem:[%s330 + $0x18] sm:%s323]
                %339 = vst [vmem:[%s331 + $0xc] sm:%s323] %v338
                %v340 = vld [vmem:[%s330 + $0x20] sm:%s323]
                %341 = vst [vmem:[%s331 + $0x10] sm:%s323] %v340
                %v342 = vld [vmem:[%s330 + $0x28] sm:%s323]
                %343 = vst [vmem:[%s331 + $0x14] sm:%s323] %v342
                %v344 = vld [vmem:[%s330 + $0x30] sm:%s323]
                %345 = vst [vmem:[%s331 + $0x18] sm:%s323] %v344
                %v346 = vld [vmem:[%s330 + $0x38] sm:%s323]
                %347 = vst [vmem:[%s331 + $0x1c] sm:%s323] %v346
              $region65: #{tpu_custom_call.1} parent=59 // loop_footer
                %s329 = sadd.s32 1, %s325
              $region66: #{tpu_custom_call.1} parent=59 // loop_footer_branch
                %324 = sbr.rel target = $region62
              $region67: #{tpu_custom_call.1} parent=59 // loop_exit
                _
            $region60: #{tpu_custom_call.1} parent=51 // pred_fallthru
              _
          $region52: #{tpu_custom_call.1} parent=47 // pred_fallthru
            _
          %384 = vnop
        $region48: #{tpu_custom_call.1} parent=39 // pred_fallthru
          _
        // Predicated region
        $region86: #{tpu_custom_call.1} parent=39 // pred_check
          %p385 = pneg %p228
        $region87: #{tpu_custom_call.1} parent=39 // pred_check_branch
          %387 = sbr.rel (%p385) target = $region89
        $region88: #{tpu_custom_call.1} parent=39 // pred_region
          %p388 = scmp.lt.s32.totalorder %s26, 1
          %s389 = scalar_select %p388, %s26, 1
          %s390 = scalar_lea.vmem %s8, %s389
        $region89: #{tpu_custom_call.1} parent=39 // pred_fallthru
          _
      $region40: #{tpu_custom_call.1} parent=5 // pred_fallthru
        _
      %p391 = scmp.le.s32.totalorder 1, %s18
      %p392 = scmp.lt.s32.totalorder %s18, 7
      %p393 = pnand %p391, %p392
      %p394 = pneg %p393
      // Predicated region
      $region90: #{tpu_custom_call.1} parent=5 // pred_check
        _
      $region91: #{tpu_custom_call.1} parent=5 // pred_check_branch
        %396 = sbr.rel (%p393) target = $region93
      $region92: #{tpu_custom_call.1} parent=5 // pred_region
        %s397 = ssub.s32 %s18, 1
        %s398 = sand.u32 %s195, 1
        %s399 = sand.u32 %s195, 1
        %s400 = smul.addr %s399, 32
        %s401 = scalar_lea.vmem [#allocation3], %s400
        // Predicated region
        $region94: #{tpu_custom_call.1} parent=92 // pred_check
          %p402 = pneg %p208
        $region95: #{tpu_custom_call.1} parent=92 // pred_check_branch
          %404 = sbr.rel (%p402) target = $region97
        $region96: #{tpu_custom_call.1} parent=92 // pred_region
          _
        $region97: #{tpu_custom_call.1} parent=92 // pred_fallthru
          _
        %p405 = scmp.lt.s32.totalorder %s27, 2
        %s406 = scalar_select %p405, %s27, 2
        %s407 = smul.addr %s406, 2
        %s408 = smul.addr %s407, 4
        %s409 = scalar_lea.vmem %s0, %s408
        %p410 = pneg %p56
        %p411 = pneg %p53
        %p412 = pneg %p77
        %p413 = pneg %p74
        %p414 = pneg %p98
        %p415 = pneg %p95
        %p416 = pneg %p119
        %p417 = pneg %p116
        %p418 = pneg %p140
        %p419 = pneg %p137
        %p420 = pneg %p161
        %p421 = pneg %p158
        %p422 = pneg %p182
        %p423 = pneg %p179
        %s424 = sand.u32 %s195, 1
        %s425 = sand.u32 %s195, 1
        %s426 = smul.addr %s425, 32
        %s427 = scalar_lea.vmem [#allocation3], %s426
        %p428 = pneg %p208
        %p429 = pneg %p205
        %p430 = scmp.lt.s32.totalorder %s28, 1
        %s431 = scalar_select %p430, %s28, 1
        %s432 = scalar_lea.vmem %s8, %s431
        %p433 = pneg %p234
        %p434 = pneg %p231
        %p435 = pneg %p262
        %p436 = pneg %p259
        %s437 = sand.u32 %s249, 1
        %s438 = scalar_lea.sflag [#allocation5], %s437
        %s439 = sand.u32 %s249, 1
        %s440 = smul.addr %s439, 8
        %s441 = scalar_lea.vmem [#allocation4], %s440
        %p442 = scmp.lt.s32.totalorder %s27, 2
        %s443 = scalar_select %p442, %s27, 2
        %s444 = smul.addr %s443, 2
        %s445 = smul.addr %s444, 4
        %s446 = scalar_lea.vmem %s0, %s445
        %p447 = scmp.lt.s32.totalorder %s28, 1
        %s448 = scalar_select %p447, %s28, 1
        %s449 = scalar_lea.vmem %s8, %s448
        %p451 = scmp.eq.s32.totalorder %s28, 0
        // Predicated region
        $region98: #{tpu_custom_call.1} parent=92 // pred_check
          %p452 = pneg %p451
        $region99: #{tpu_custom_call.1} parent=92 // pred_check_branch
          %454 = sbr.rel (%p452) target = $region101
        $region100: #{tpu_custom_call.1} parent=92 // pred_region
          %v455 = vld [vmem:[%s446] sm:$0xff]
          %v456 = vunpack.c.l.bf16 %v455
          %v457 = vunpack.c.h.bf16 %v455
          %v458 = vmul.f32 %v456, %v456
          %v459 = vmul.f32 %v457, %v457
          %v460 = vadd.f32 %v458, %v459
          %461 = vadd.xlane.f32.xlu0 %v460
          %v462 = vpop.xlane.xlu0 %461
          %v463 = vmax.f32 %v462, 1e-24
          %v464 = vrsqrt.pop %v463
          %v465 = vmul.f32 %v464, %v463
          %v466 = vmul.f32 %v465, %v464
          %v467 = vmul.f32 0.5, %v466
          %v468 = vsub.f32 1.5, %v467
          %v469 = vmul.f32 %v464, %v468
          %vm470 = vweird.f32 %v463
          %vm471 = vweird.f32 %v464
          %vm472 = vmor %vm470, %vm471
          %v473 = vsel %vm472, %v464, %v469
          %v474 = vpack.c.bf16 %v473, %v473
          %v475 = vunpack.c.l.bf16 %v474
          %v476 = vmul.f32 %v456, %v475
          %v477 = vmul.f32 %v457, %v475
          %v478 = vpack.c.bf16 %v476, %v476
          %v479 = vpack.c.bf16 %v477, %v477
          %v480 = vld [vmem:[%s1] sm:$0xf]
          %v481 = vld [vmem:[%s1 + $0x4] sm:$0xf]
          %v482 = vld [vmem:[%s1 + $0x8] sm:$0xf]
          %v483 = vld [vmem:[%s1 + $0xc] sm:$0xf]
          %v484 = vld [vmem:[%s1 + $0x10] sm:$0xf]
          %v485 = vld [vmem:[%s1 + $0x14] sm:$0xf]
          %v486 = vld [vmem:[%s1 + $0x18] sm:$0xf]
          %v487 = vld [vmem:[%s1 + $0x1c] sm:$0xf]
          %v488 = vld [vmem:[%s1 + $0x20] sm:$0xf]
          %v489 = vld [vmem:[%s1 + $0x24] sm:$0xf]
          %v490 = vld [vmem:[%s1 + $0x28] sm:$0xf]
          %v491 = vld [vmem:[%s1 + $0x2c] sm:$0xf]
          %v492 = vld [vmem:[%s1 + $0x30] sm:$0xf]
          %v493 = vld [vmem:[%s1 + $0x34] sm:$0xf]
          %v494 = vld [vmem:[%s1 + $0x38] sm:$0xf]
          %v495 = vld [vmem:[%s1 + $0x3c] sm:$0xf]
          %v496 = vld [vmem:[%s1 + $0x40] sm:$0xf]
          %v497 = vld [vmem:[%s1 + $0x44] sm:$0xf]
          %v498 = vld [vmem:[%s1 + $0x48] sm:$0xf]
          %v499 = vld [vmem:[%s1 + $0x4c] sm:$0xf]
          %v500 = vld [vmem:[%s1 + $0x50] sm:$0xf]
          %v501 = vld [vmem:[%s1 + $0x54] sm:$0xf]
          %v502 = vld [vmem:[%s1 + $0x58] sm:$0xf]
          %v503 = vld [vmem:[%s1 + $0x5c] sm:$0xf]
          %v504 = vld [vmem:[%s1 + $0x60] sm:$0xf]
          %v505 = vld [vmem:[%s1 + $0x64] sm:$0xf]
          %v506 = vld [vmem:[%s1 + $0x68] sm:$0xf]
          %v507 = vld [vmem:[%s1 + $0x6c] sm:$0xf]
          %v508 = vld [vmem:[%s1 + $0x70] sm:$0xf]
          %v509 = vld [vmem:[%s1 + $0x74] sm:$0xf]
          %v510 = vld [vmem:[%s1 + $0x78] sm:$0xf]
          %v511 = vld [vmem:[%s1 + $0x7c] sm:$0xf]
          %v512 = vld [vmem:[%s2] sm:$0x1]
          %v514 = vperm.slane %v512, 0
          %v548 = vunpack.c.l.b16 %v480
          %v549 = vunpack.c.l.b16 %v481
          %v550 = vunpack.c.l.b16 %v482
          %v551 = vunpack.c.l.b16 %v483
          %v552 = vunpack.c.l.b16 %v484
          %v553 = vunpack.c.l.b16 %v485
          %v554 = vunpack.c.l.b16 %v486
          %v555 = vunpack.c.l.b16 %v487
          %v556 = vunpack.c.l.b16 %v488
          %v557 = vunpack.c.l.b16 %v489
          %v558 = vunpack.c.l.b16 %v490
          %v559 = vunpack.c.l.b16 %v491
          %v560 = vunpack.c.l.b16 %v492
          %v561 = vunpack.c.l.b16 %v493
          %v562 = vunpack.c.l.b16 %v494
          %v563 = vunpack.c.l.b16 %v495
          %v564 = vunpack.c.l.b16 %v496
          %v565 = vunpack.c.l.b16 %v497
          %v566 = vunpack.c.l.b16 %v498
          %v567 = vunpack.c.l.b16 %v499
          %v568 = vunpack.c.l.b16 %v500
          %v569 = vunpack.c.l.b16 %v501
          %v570 = vunpack.c.l.b16 %v502
          %v571 = vunpack.c.l.b16 %v503
          %v572 = vunpack.c.l.b16 %v504
          %v573 = vunpack.c.l.b16 %v505
          %v574 = vunpack.c.l.b16 %v506
          %v575 = vunpack.c.l.b16 %v507
          %v576 = vunpack.c.l.b16 %v508
          %v577 = vunpack.c.l.b16 %v509
          %v578 = vunpack.c.l.b16 %v510
          %v579 = vunpack.c.l.b16 %v511
          %v580 = vpack.c.b16 %v549, %v548
          %v581 = vpack.c.b16 %v551, %v550
          %v582 = vpack.c.b16 %v553, %v552
          %v583 = vpack.c.b16 %v555, %v554
          %v584 = vpack.c.b16 %v557, %v556
          %v585 = vpack.c.b16 %v559, %v558
          %v586 = vpack.c.b16 %v561, %v560
          %v587 = vpack.c.b16 %v563, %v562
          %v588 = vpack.c.b16 %v565, %v564
          %v589 = vpack.c.b16 %v567, %v566
          %v590 = vpack.c.b16 %v569, %v568
          %v591 = vpack.c.b16 %v571, %v570
          %v592 = vpack.c.b16 %v573, %v572
          %v593 = vpack.c.b16 %v575, %v574
          %v594 = vpack.c.b16 %v577, %v576
          %v595 = vpack.c.b16 %v579, %v578
          %612 = vmatpush.bf16.msra.mxu0 %v587
          %613 = vmatpush.bf16.msra.mxu0 %v586
          %614 = vmatpush.bf16.msra.mxu0 %v585
          %615 = vmatpush.bf16.msra.mxu0 %v584
          %616 = vmatpush.bf16.msra.mxu0 %v583
          %617 = vmatpush.bf16.msra.mxu0 %v582
          %618 = vmatpush.bf16.msra.mxu0 %v581
          %619 = vmatpush.bf16.msra.mxu0 %v580
          %620 = vmatmul.bf16.gmra.mxu0 %v478
          %v621 = vpop.f32.mrf.mxu0
          %v622 = vadd.f32 %v514, %v621
          %v623 = vpop.f32.mrf.mxu0
          %624 = vdwg.mxu0
          %625 = vmatpush.bf16.msra.mxu0 %v595
          %626 = vmatpush.bf16.msra.mxu0 %v594
          %627 = vmatpush.bf16.msra.mxu0 %v593
          %628 = vmatpush.bf16.msra.mxu0 %v592
          %629 = vmatpush.bf16.msra.mxu0 %v591
          %630 = vmatpush.bf16.msra.mxu0 %v590
          %631 = vmatpush.bf16.msra.mxu0 %v589
          %632 = vmatpush.bf16.msra.mxu0 %v588
          %633 = vmatmul.bf16.gmra.mxu0 %v479
          %v634 = vpop.f32.mrf.mxu0
          %v635 = vadd.f32 %v622, %v634
          %v636 = vpop.f32.mrf.mxu0
          %637 = vdwg.mxu0
          %v638 = vtanh.pop %v635
          %v639 = vpack.c.bf16 %v638, %v638
          %v640 = vld [vmem:[%s3] sm:$0xf]
          %v641 = vld [vmem:[%s3 + $0x4] sm:$0xf]
          %v642 = vld [vmem:[%s3 + $0x8] sm:$0xf]
          %v643 = vld [vmem:[%s3 + $0xc] sm:$0xf]
          %v644 = vld [vmem:[%s3 + $0x10] sm:$0xf]
          %v645 = vld [vmem:[%s3 + $0x14] sm:$0xf]
          %v646 = vld [vmem:[%s3 + $0x18] sm:$0xf]
          %v647 = vld [vmem:[%s3 + $0x1c] sm:$0xf]
          %v648 = vld [vmem:[%s4] sm:$0x1]
          %v650 = vperm.slane %v648, 0
          %v660 = vunpack.c.l.b16 %v640
          %v661 = vunpack.c.l.b16 %v641
          %v662 = vunpack.c.l.b16 %v642
          %v663 = vunpack.c.l.b16 %v643
          %v664 = vunpack.c.l.b16 %v644
          %v665 = vunpack.c.l.b16 %v645
          %v666 = vunpack.c.l.b16 %v646
          %v667 = vunpack.c.l.b16 %v647
          %v668 = vpack.c.b16 %v661, %v660
          %v669 = vpack.c.b16 %v663, %v662
          %v670 = vpack.c.b16 %v665, %v664
          %v671 = vpack.c.b16 %v667, %v666
          %vm676 = vcmask 523264
          %v678 = vsel %vm676, %v639, 0
          %680 = vmatpush.bf16.msra.mxu0 0
          %681 = vmatpush.bf16.msra.mxu0 0
          %682 = vmatpush.bf16.msra.mxu0 0
          %683 = vmatpush.bf16.msra.mxu0 0
          %684 = vmatpush.bf16.msra.mxu0 %v671
          %685 = vmatpush.bf16.msra.mxu0 %v670
          %686 = vmatpush.bf16.msra.mxu0 %v669
          %687 = vmatpush.bf16.msra.mxu0 %v668
          %688 = vmatmul.bf16.gmra.mxu0 %v678
          %v689 = vpop.f32.mrf.mxu0
          %v690 = vadd.f32 %v650, %v689
          %v691 = vpop.f32.mrf.mxu0
          %692 = vdwg.mxu0
          %v693 = vtanh.pop %v690
          %v694 = vpack.c.bf16 %v693, %v693
          %v695 = vld [vmem:[%s5] sm:$0xf]
          %v696 = vld [vmem:[%s5 + $0x4] sm:$0xf]
          %v697 = vld [vmem:[%s5 + $0x8] sm:$0xf]
          %v698 = vld [vmem:[%s5 + $0xc] sm:$0xf]
          %v699 = vld [vmem:[%s6] sm:$0x1]
          %v701 = vperm.slane %v699, 0
          %v707 = vunpack.c.l.b16 %v695
          %v708 = vunpack.c.l.b16 %v696
          %v709 = vunpack.c.l.b16 %v697
          %v710 = vunpack.c.l.b16 %v698
          %v711 = vpack.c.b16 %v708, %v707
          %v712 = vpack.c.b16 %v710, %v709
          %vm715 = vcmask 261120
          %v717 = vsel %vm715, %v694, 0
          %719 = vmatpush.bf16.msra.mxu0 0
          %720 = vmatpush.bf16.msra.mxu0 0
          %721 = vmatpush.bf16.msra.mxu0 0
          %722 = vmatpush.bf16.msra.mxu0 0
          %723 = vmatpush.bf16.msra.mxu0 0
          %724 = vmatpush.bf16.msra.mxu0 0
          %725 = vmatpush.bf16.msra.mxu0 %v712
          %726 = vmatpush.bf16.msra.mxu0 %v711
          %727 = vmatmul.bf16.gmra.mxu0 %v717
          %v728 = vpop.f32.mrf.mxu0
          %v729 = vadd.f32 %v701, %v728
          %v730 = vpop.f32.mrf.mxu0
          %731 = vdwg.mxu0
          %v732 = vtanh.pop %v729
          %v733 = vpack.c.bf16 %v732, %v732
          %vm734 = vcmask 519168
          %735 = vst.msk [vmem:[#allocation2] sm:$0xf] %vm734, %v733
        $region101: #{tpu_custom_call.1} parent=92 // pred_fallthru
          _
        %v736 = vld [vmem:[%s401] sm:$0xf]
        %v737 = vld [vmem:[%s401 + $0x4] sm:$0xf]
        %v738 = vld [vmem:[%s401 + $0x8] sm:$0xf]
        %v739 = vld [vmem:[%s401 + $0xc] sm:$0xf]
        %v740 = vld [vmem:[%s401 + $0x10] sm:$0xf]
        %v741 = vld [vmem:[%s401 + $0x14] sm:$0xf]
        %v742 = vld [vmem:[%s401 + $0x18] sm:$0xf]
        %v743 = vld [vmem:[%s401 + $0x1c] sm:$0xf]
        %v744 = vld [vmem:[%s449] sm:$0x1]
        %v745 = vld [vmem:[#allocation2] sm:$0xf]
        %v747 = vperm.slane %v744, 0
        %v757 = vunpack.c.l.b16 %v736
        %v758 = vunpack.c.l.b16 %v737
        %v759 = vunpack.c.l.b16 %v738
        %v760 = vunpack.c.l.b16 %v739
        %v761 = vunpack.c.l.b16 %v740
        %v762 = vunpack.c.l.b16 %v741
        %v763 = vunpack.c.l.b16 %v742
        %v764 = vunpack.c.l.b16 %v743
        %v765 = vpack.c.b16 %v758, %v757
        %v766 = vpack.c.b16 %v760, %v759
        %v767 = vpack.c.b16 %v762, %v761
        %v768 = vpack.c.b16 %v764, %v763
        %vm773 = vcmask 523264
        %v775 = vsel %vm773, %v745, 0
        %777 = vmatpush.bf16.msra.mxu0 0
        %778 = vmatpush.bf16.msra.mxu0 0
        %779 = vmatpush.bf16.msra.mxu0 0
        %780 = vmatpush.bf16.msra.mxu0 0
        %781 = vmatpush.bf16.msra.mxu0 %v768
        %782 = vmatpush.bf16.msra.mxu0 %v767
        %783 = vmatpush.bf16.msra.mxu0 %v766
        %784 = vmatpush.bf16.msra.mxu0 %v765
        %785 = vmatmul.bf16.gmra.mxu0 %v775
        %v786 = vpop.f32.mrf.mxu0
        %v787 = vadd.f32 %v747, %v786
        %v788 = vpop.f32.mrf.mxu0
        %789 = vdwg.mxu0
        %790 = vst [vmem:[%s441] sm:$0xff] %v787
        %s791 = sand.u32 %s249, 1
        %s792 = scalar_lea.sflag [#allocation5], %s791
        %s793 = sand.u32 %s249, 1
        %s794 = smul.addr %s793, 8
        %s795 = scalar_lea.vmem [#allocation4], %s794
        // Predicated region
        $region102: #{tpu_custom_call.1} parent=92 // pred_check
          %p796 = pneg %p259
        $region103: #{tpu_custom_call.1} parent=92 // pred_check_branch
          %798 = sbr.rel (%p796) target = $region105
        $region104: #{tpu_custom_call.1} parent=92 // pred_region
          %800 = vsyncadd %s792, 0
          %s801 = smul.addr %s27, 2
          %s802 = sadd.s32 %s28, %s801
          %s803 = smul.addr %s802, 8
          %s804 = scalar_lea.hbm %s9, %s803
          %s806 = sshll.u32 %s795, 4
          %s807 = int_to_ptr.vmem [resolvable:$true] %s806
          %s808 = sshll.u32 %s804, 4
          %s809 = int_to_ptr.hbm [resolvable:$true] %s808
          %811 = dma.vmem_to_hbm [thread:$0]  %s807, 128, %s809, %s792
        $region105: #{tpu_custom_call.1} parent=92 // pred_fallthru
          _
      $region93: #{tpu_custom_call.1} parent=5 // pred_fallthru
        _
      %p812 = scmp.le.s32.totalorder 2, %s18
      // Predicated region
      $region106: #{tpu_custom_call.1} parent=5 // pred_check
        %p813 = pneg %p812
      $region107: #{tpu_custom_call.1} parent=5 // pred_check_branch
        %815 = sbr.rel (%p813) target = $region109
      $region108: #{tpu_custom_call.1} parent=5 // pred_region
        %s816 = ssub.s32 %s18, 2
        // Predicated region
        $region110: #{tpu_custom_call.1} parent=108 // pred_check
          %p817 = pneg %p265
        $region111: #{tpu_custom_call.1} parent=108 // pred_check_branch
          %819 = sbr.rel (%p817) target = $region113
        $region112: #{tpu_custom_call.1} parent=108 // pred_region
          %s820 = sand.u32 %s250, 1
          %s821 = scalar_lea.sflag [#allocation5], %s820
          %s822 = sand.u32 %s250, 1
          %s823 = smul.addr %s822, 8
          %s824 = scalar_lea.vmem [#allocation4], %s823
          %826 = dma.done %s821, 128
        $region113: #{tpu_custom_call.1} parent=108 // pred_fallthru
          _
      $region109: #{tpu_custom_call.1} parent=5 // pred_fallthru
        _
    $region6: #{tpu_custom_call.1} parent=1 // loop_footer
      %s22 = sadd.s32 1, %s18
    $region7: #{tpu_custom_call.1} parent=1 // loop_footer_branch
      %17 = sbr.rel target = $region3
    $region8: #{tpu_custom_call.1} parent=1 // loop_exit
      _
    %827 = vsyncpa [#allocation5], 1
    %s828 = scalar_lea.sflag [#allocation5], 1
    %829 = vsyncpa %s828, 1

</llo_original>
